<compile_context>
chip_gen: v6e
topology: v6e:2x2x1
jax: 0.10.0
libtpu: 0.0.40
codegen_flags: <defaults>
</compile_context>

<pallas_src>
import functools

import jax
import jax.numpy as jnp
import numpy as np
from jax.experimental import pallas as pl
from jax.experimental.pallas import tpu as pltpu


# ----------------------------------------------------------------------------
# Pallas kernel: entire QLSTM forward in one invocation.
# ----------------------------------------------------------------------------
def _qlstm_kernel(x_ref, win_ref, bin_ref, uh_ref, wfco_ref, bfco_ref,
                  gsum_ref, out_ref, hall_ref, *, T, B, HP):
    """Fused QLSTM forward.

    x_ref    : (T*B, F)        flattened input sequence
    win_ref  : (F, 4*HP)       packed, per-gate lane-padded input weights (f,i,o,c)
    bin_ref  : (1, 4*HP)       packed, padded input biases
    uh_ref   : (HP, 4*HP)      packed, padded recurrent weights (no bias)
    wfco_ref : (HP, OUT_PAD)   padded fco weight
    bfco_ref : (1, OUT_PAD)    padded fco bias
    gsum_ref : (OUT_PAD, OUT_PAD) block-diagonal group-of-4 summing matrix
    out_ref  : (T*B, OUT_PAD)  padded, normalized output (lane dense)
    hall_ref : (T*B, HP)       VMEM scratch holding every timestep's h
    """
    # One-shot input projection for all timesteps & all 4 gates (bias folded).
    wx_all = (jnp.dot(x_ref[...], win_ref[...],
                      preferred_element_type=jnp.float32) + bin_ref[...])

    h = jnp.zeros((B, HP), jnp.float32)
    c = jnp.zeros((B, HP), jnp.float32)

    # Sequential recurrence: fully unrolled static loop. Only the
    # (B,HP)@(HP,4HP) recurrent dot + gating stays on the serial path.
    for t in range(T):
        wx_t = wx_all[t * B:(t + 1) * B, :]                      # static slice
        g = wx_t + jnp.dot(h, uh_ref[...],
                           preferred_element_type=jnp.float32)   # (B, 4*HP)
        ft = jax.nn.sigmoid(g[:, 0 * HP:1 * HP])                 # lane-aligned
        it = jax.nn.sigmoid(g[:, 1 * HP:2 * HP])
        ot = jax.nn.sigmoid(g[:, 2 * HP:3 * HP])
        at = g[:, 3 * HP:4 * HP]
        c = it * jnp.tanh(at) + ft * c
        h = ot * jnp.tanh(c)
        hall_ref[t * B:(t + 1) * B, :] = h                       # static store

    # fco projection + bias for ALL timesteps at once (hoisted off serial path).
    o = (jnp.dot(hall_ref[...], wfco_ref[...],
                 preferred_element_type=jnp.float32) + bfco_ref[...])

    # TODO(synk): normalize_quaternions source unavailable; implemented as
    # per-quaternion (groups of 4 along the class dim) L2 normalization w/ eps.
    # Group-of-4 |q|^2 via block-diagonal matmul (lane friendly), then rsqrt.
    nsq = jnp.dot(o * o, gsum_ref[...], preferred_element_type=jnp.float32)
    out_ref[...] = o * jax.lax.rsqrt(nsq + 1e-12)                # lane-dense store


def qlstm_forward(x, w_in_p, b_in_p, u_h_p, w_fco_p, b_fco_p, *, num_classes):
    """x: (T, B, F) f32.  Padded/packed params as built in __main__.
    Returns (T, B, num_classes) f32."""
    T, B, F = x.shape
    HP = u_h_p.shape[0]
    OUT_PAD = w_fco_p.shape[1]

    x2d = x.reshape(T * B, F)

    # Block-diagonal group-of-4 summation matrix (constant).
    grp = np.arange(OUT_PAD) // 4
    gsum = jnp.asarray((grp[:, None] == grp[None, :]).astype(np.float32))

    kernel = functools.partial(_qlstm_kernel, T=T, B=B, HP=HP)

    out_p = pl.pallas_call(
        kernel,
        out_shape=jax.ShapeDtypeStruct((T * B, OUT_PAD), jnp.float32),
        in_specs=[pl.BlockSpec(memory_space=pltpu.MemorySpace.VMEM)
                  for _ in range(7)],
        out_specs=pl.BlockSpec(memory_space=pltpu.MemorySpace.VMEM),
        scratch_shapes=[pltpu.VMEM((T * B, HP), jnp.float32)],   # h for all t
    )(x2d, w_in_p, b_in_p, u_h_p, w_fco_p, b_fco_p, gsum)

    return out_p[:, :num_classes].reshape(T, B, num_classes)


# ----------------------------------------------------------------------------
# Parameter construction (deterministic).
# ----------------------------------------------------------------------------
def make_quaternion_weight(key, in_features, out_features, scale=0.2):
    """Build the full (in, out) matrix exactly as quaternion_linear() does:
       W = cat([cat([r,-i,-j,-k],0), cat([i,r,-k,j],0),
                cat([j,k,r,-i],0),   cat([k,-j,i,r],0)], 1);  y = x @ W (+ b)."""
    i4, o4 = in_features // 4, out_features // 4
    kr, ki, kj, kk = jax.random.split(key, 4)
    r = jax.random.normal(kr, (i4, o4), jnp.float32) * scale
    i = jax.random.normal(ki, (i4, o4), jnp.float32) * scale
    j = jax.random.normal(kj, (i4, o4), jnp.float32) * scale
    k = jax.random.normal(kk, (i4, o4), jnp.float32) * scale
    col_r = jnp.concatenate([r, -i, -j, -k], axis=0)
    col_i = jnp.concatenate([i,  r, -k,  j], axis=0)
    col_j = jnp.concatenate([j,  k,  r, -i], axis=0)
    col_k = jnp.concatenate([k, -j,  i,  r], axis=0)
    return jnp.concatenate([col_r, col_i, col_j, col_k], axis=1)  # (in, out)


# ----------------------------------------------------------------------------
# Pure-JAX reference (unpadded), for sanity check only.
# ----------------------------------------------------------------------------
def qlstm_reference(x, w_in, b_in, u_h, w_fco, b_fco, hidden):
    T, B, F = x.shape
    H = hidden
    C = w_fco.shape[1]
    wx_all = jnp.einsum('tbf,fg->tbg', x, w_in) + b_in  # (T, B, 4H)

    def step(carry, wx):
        h, c = carry
        g = wx + h @ u_h
        ft = jax.nn.sigmoid(g[:, 0 * H:1 * H])
        it = jax.nn.sigmoid(g[:, 1 * H:2 * H])
        ot = jax.nn.sigmoid(g[:, 2 * H:3 * H])
        at = g[:, 3 * H:4 * H]
        c = it * jnp.tanh(at) + ft * c
        h = ot * jnp.tanh(c)
        o = h @ w_fco + b_fco
        return (h, c), o

    h0 = jnp.zeros((B, H), jnp.float32)
    c0 = jnp.zeros((B, H), jnp.float32)
    _, outs = jax.lax.scan(step, (h0, c0), wx_all)          # (T, B, C)
    q = outs.reshape(T, B, C // 4, 4)
    q = q * jax.lax.rsqrt(jnp.sum(q * q, axis=-1, keepdims=True) + 1e-12)
    return q.reshape(T, B, C)


# ----------------------------------------------------------------------------
if __name__ == "__main__":
    T, B, F, H = 8, 2, 4, 32          # seq=8, batch=2, feat_size=4, hidden=32
    C = F                             # num_classes == feat_size
    HP = max(128, ((H + 127) // 128) * 128)        # per-gate lane padding
    OUT_PAD = max(128, ((C + 127) // 128) * 128)   # lane-dense output width

    key = jax.random.PRNGKey(0)
    keys = jax.random.split(key, 16)

    x = jax.random.normal(keys[0], (T, B, F), jnp.float32)

    # Quaternion input-projection weights (with bias), gate order: f, i, o, c.
    Wfx = make_quaternion_weight(keys[1], F, H)
    Wix = make_quaternion_weight(keys[2], F, H)
    Wox = make_quaternion_weight(keys[3], F, H)
    Wcx = make_quaternion_weight(keys[4], F, H)
    bfx = jax.random.normal(keys[5], (H,), jnp.float32) * 0.05
    bix = jax.random.normal(keys[6], (H,), jnp.float32) * 0.05
    box = jax.random.normal(keys[7], (H,), jnp.float32) * 0.05
    bcx = jax.random.normal(keys[8], (H,), jnp.float32) * 0.05

    # Quaternion recurrent weights (no bias), gate order: f, i, o, c.
    Ufh = make_quaternion_weight(keys[9], H, H)
    Uih = make_quaternion_weight(keys[10], H, H)
    Uoh = make_quaternion_weight(keys[11], H, H)
    Uch = make_quaternion_weight(keys[12], H, H)

    # fco: nn.Linear(H, C) stored as right-multiply (H, C).
    Wfco = jax.random.normal(keys[13], (H, C), jnp.float32) * 0.2
    bfco = jax.random.normal(keys[14], (C,), jnp.float32) * 0.05

    # --- pack into lane-padded layouts for the kernel ------------------------
    # Each gate occupies its own 128-lane block; unused rows/cols are zero so
    # the padded lanes of h/c stay exactly zero through the recurrence.
    w_in_p = jnp.zeros((F, 4 * HP), jnp.float32)
    b_in_p = jnp.zeros((1, 4 * HP), jnp.float32)
    u_h_p = jnp.zeros((HP, 4 * HP), jnp.float32)
    for gi, (Wg, bg, Ug) in enumerate([(Wfx, bfx, Ufh), (Wix, bix, Uih),
                                       (Wox, box, Uoh), (Wcx, bcx, Uch)]):
        w_in_p = w_in_p.at[:, gi * HP:gi * HP + H].set(Wg)
        b_in_p = b_in_p.at[0, gi * HP:gi * HP + H].set(bg)
        u_h_p = u_h_p.at[:H, gi * HP:gi * HP + H].set(Ug)
    w_fco_p = jnp.zeros((HP, OUT_PAD), jnp.float32).at[:H, :C].set(Wfco)
    b_fco_p = jnp.zeros((1, OUT_PAD), jnp.float32).at[0, :C].set(bfco)

    out = qlstm_forward(x, w_in_p, b_in_p, u_h_p, w_fco_p, b_fco_p,
                        num_classes=C)
    out = jax.block_until_ready(out)

    # --- reference (unpadded, plain JAX) --------------------------------------
    w_in = jnp.concatenate([Wfx, Wix, Wox, Wcx], axis=1)      # (F, 4H)
    b_in = jnp.concatenate([bfx, bix, box, bcx], axis=0)      # (4H,)
    u_h = jnp.concatenate([Ufh, Uih, Uoh, Uch], axis=1)       # (H, 4H)
    ref = jax.block_until_ready(
        qlstm_reference(x, w_in, b_in, u_h, Wfco, bfco, H))

    assert out.shape == (T, B, C), out.shape
    np.testing.assert_allclose(np.asarray(out), np.asarray(ref),
                               rtol=1e-2, atol=1e-2)
    print("KERNEL_OK")
</pallas_src>

<mosaic_0001>
module attributes {stable_mosaic.version = 11 : i64} {
  func.func @_qlstm_kernel(%arg0: memref<16x4xf32, #tpu.memory_space<vmem>>, %arg1: memref<4x512xf32, #tpu.memory_space<vmem>>, %arg2: memref<1x512xf32, #tpu.memory_space<vmem>>, %arg3: memref<128x512xf32, #tpu.memory_space<vmem>>, %arg4: memref<128x128xf32, #tpu.memory_space<vmem>>, %arg5: memref<1x128xf32, #tpu.memory_space<vmem>>, %arg6: memref<128x128xf32, #tpu.memory_space<vmem>>, %arg7: memref<16x128xf32, #tpu.memory_space<vmem>>, %arg8: memref<16x128xf32, #tpu.memory_space<vmem>>) attributes {dimension_semantics = [], scalar_prefetch = 0 : i64, scratch_operands = 1 : i64, tpu.core_type = #tpu.core_type<tc>} {
    %c0 = arith.constant 0 : index
    %c0_0 = arith.constant 0 : index
    %0 = vector.load %arg0[%c0, %c0_0] : memref<16x4xf32, #tpu.memory_space<vmem>>, vector<16x4xf32>
    %c0_1 = arith.constant 0 : index
    %c0_2 = arith.constant 0 : index
    %1 = vector.load %arg1[%c0_1, %c0_2] : memref<4x512xf32, #tpu.memory_space<vmem>>, vector<4x512xf32>
    %cst = arith.constant dense<0.000000e+00> : vector<16x512xf32>
    %2 = tpu.matmul %0, %1, %cst {dimension_numbers = #tpu.dot_dimension_numbers<[1], [0], [0], [1], [0, 0, 1, 1], [], []>} : vector<16x4xf32>, vector<4x512xf32>, vector<16x512xf32> -> vector<16x512xf32>
    %c0_3 = arith.constant 0 : index
    %c0_4 = arith.constant 0 : index
    %3 = vector.load %arg2[%c0_3, %c0_4] : memref<1x512xf32, #tpu.memory_space<vmem>>, vector<1x512xf32>
    %4 = vector.broadcast %3 : vector<1x512xf32> to vector<16x512xf32>
    %5 = arith.addf %2, %4 : vector<16x512xf32>
    %cst_5 = arith.constant 0.000000e+00 : f32
    %6 = vector.broadcast %cst_5 : f32 to vector<2x128xf32>
    %cst_6 = arith.constant 0.000000e+00 : f32
    %7 = vector.broadcast %cst_6 : f32 to vector<2x128xf32>
    %8 = vector.extract_strided_slice %5 {offsets = [0, 0], sizes = [2, 512], strides = [1, 1]} : vector<16x512xf32> to vector<2x512xf32>
    %c0_7 = arith.constant 0 : index
    %c0_8 = arith.constant 0 : index
    %9 = vector.load %arg3[%c0_7, %c0_8] : memref<128x512xf32, #tpu.memory_space<vmem>>, vector<128x512xf32>
    %cst_9 = arith.constant dense<0.000000e+00> : vector<2x512xf32>
    %10 = tpu.matmul %6, %9, %cst_9 {dimension_numbers = #tpu.dot_dimension_numbers<[1], [0], [0], [1], [0, 0, 1, 1], [], []>} : vector<2x128xf32>, vector<128x512xf32>, vector<2x512xf32> -> vector<2x512xf32>
    %11 = arith.addf %8, %10 : vector<2x512xf32>
    %12 = vector.extract_strided_slice %11 {offsets = [0, 0], sizes = [2, 128], strides = [1, 1]} : vector<2x512xf32> to vector<2x128xf32>
    %13 = arith.negf %12 : vector<2x128xf32>
    %14 = math.exp %13 : vector<2x128xf32>
    %cst_10 = arith.constant 1.000000e+00 : f32
    %15 = vector.broadcast %cst_10 : f32 to vector<2x128xf32>
    %16 = arith.addf %15, %14 : vector<2x128xf32>
    %17 = arith.divf %15, %16 : vector<2x128xf32>
    %18 = vector.extract_strided_slice %11 {offsets = [0, 128], sizes = [2, 128], strides = [1, 1]} : vector<2x512xf32> to vector<2x128xf32>
    %19 = arith.negf %18 : vector<2x128xf32>
    %20 = math.exp %19 : vector<2x128xf32>
    %cst_11 = arith.constant 1.000000e+00 : f32
    %21 = vector.broadcast %cst_11 : f32 to vector<2x128xf32>
    %22 = arith.addf %21, %20 : vector<2x128xf32>
    %23 = arith.divf %21, %22 : vector<2x128xf32>
    %24 = vector.extract_strided_slice %11 {offsets = [0, 256], sizes = [2, 128], strides = [1, 1]} : vector<2x512xf32> to vector<2x128xf32>
    %25 = arith.negf %24 : vector<2x128xf32>
    %26 = math.exp %25 : vector<2x128xf32>
    %cst_12 = arith.constant 1.000000e+00 : f32
    %27 = vector.broadcast %cst_12 : f32 to vector<2x128xf32>
    %28 = arith.addf %27, %26 : vector<2x128xf32>
    %29 = arith.divf %27, %28 : vector<2x128xf32>
    %30 = vector.extract_strided_slice %11 {offsets = [0, 384], sizes = [2, 128], strides = [1, 1]} : vector<2x512xf32> to vector<2x128xf32>
    %31 = math.tanh %30 : vector<2x128xf32>
    %32 = arith.mulf %23, %31 : vector<2x128xf32>
    %33 = arith.mulf %17, %7 : vector<2x128xf32>
    %34 = arith.addf %32, %33 : vector<2x128xf32>
    %35 = math.tanh %34 : vector<2x128xf32>
    %36 = arith.mulf %29, %35 : vector<2x128xf32>
    %c0_13 = arith.constant 0 : index
    %c0_14 = arith.constant 0 : index
    %37 = vector.load %arg8[%c0_13, %c0_14] : memref<16x128xf32, #tpu.memory_space<vmem>>, vector<2x128xf32>
    tpu.vector_store %arg8[%c0_13, %c0_14], %36 {strides = array<i32>} : memref<16x128xf32, #tpu.memory_space<vmem>>, vector<2x128xf32>,
    %38 = vector.extract_strided_slice %5 {offsets = [2, 0], sizes = [2, 512], strides = [1, 1]} : vector<16x512xf32> to vector<2x512xf32>
    %c0_15 = arith.constant 0 : index
    %c0_16 = arith.constant 0 : index
    %39 = vector.load %arg3[%c0_15, %c0_16] : memref<128x512xf32, #tpu.memory_space<vmem>>, vector<128x512xf32>
    %cst_17 = arith.constant dense<0.000000e+00> : vector<2x512xf32>
    %40 = tpu.matmul %36, %39, %cst_17 {dimension_numbers = #tpu.dot_dimension_numbers<[1], [0], [0], [1], [0, 0, 1, 1], [], []>} : vector<2x128xf32>, vector<128x512xf32>, vector<2x512xf32> -> vector<2x512xf32>
    %41 = arith.addf %38, %40 : vector<2x512xf32>
    %42 = vector.extract_strided_slice %41 {offsets = [0, 0], sizes = [2, 128], strides = [1, 1]} : vector<2x512xf32> to vector<2x128xf32>
    %43 = arith.negf %42 : vector<2x128xf32>
    %44 = math.exp %43 : vector<2x128xf32>
    %cst_18 = arith.constant 1.000000e+00 : f32
    %45 = vector.broadcast %cst_18 : f32 to vector<2x128xf32>
    %46 = arith.addf %45, %44 : vector<2x128xf32>
    %47 = arith.divf %45, %46 : vector<2x128xf32>
    %48 = vector.extract_strided_slice %41 {offsets = [0, 128], sizes = [2, 128], strides = [1, 1]} : vector<2x512xf32> to vector<2x128xf32>
    %49 = arith.negf %48 : vector<2x128xf32>
    %50 = math.exp %49 : vector<2x128xf32>
    %cst_19 = arith.constant 1.000000e+00 : f32
    %51 = vector.broadcast %cst_19 : f32 to vector<2x128xf32>
    %52 = arith.addf %51, %50 : vector<2x128xf32>
    %53 = arith.divf %51, %52 : vector<2x128xf32>
    %54 = vector.extract_strided_slice %41 {offsets = [0, 256], sizes = [2, 128], strides = [1, 1]} : vector<2x512xf32> to vector<2x128xf32>
    %55 = arith.negf %54 : vector<2x128xf32>
    %56 = math.exp %55 : vector<2x128xf32>
    %cst_20 = arith.constant 1.000000e+00 : f32
    %57 = vector.broadcast %cst_20 : f32 to vector<2x128xf32>
    %58 = arith.addf %57, %56 : vector<2x128xf32>
    %59 = arith.divf %57, %58 : vector<2x128xf32>
    %60 = vector.extract_strided_slice %41 {offsets = [0, 384], sizes = [2, 128], strides = [1, 1]} : vector<2x512xf32> to vector<2x128xf32>
    %61 = math.tanh %60 : vector<2x128xf32>
    %62 = arith.mulf %53, %61 : vector<2x128xf32>
    %63 = arith.mulf %47, %34 : vector<2x128xf32>
    %64 = arith.addf %62, %63 : vector<2x128xf32>
    %65 = math.tanh %64 : vector<2x128xf32>
    %66 = arith.mulf %59, %65 : vector<2x128xf32>
    %c2 = arith.constant 2 : index
    %c0_21 = arith.constant 0 : index
    %67 = vector.load %arg8[%c2, %c0_21] : memref<16x128xf32, #tpu.memory_space<vmem>>, vector<2x128xf32>
    tpu.vector_store %arg8[%c2, %c0_21], %66 {strides = array<i32>} : memref<16x128xf32, #tpu.memory_space<vmem>>, vector<2x128xf32>,
    %68 = vector.extract_strided_slice %5 {offsets = [4, 0], sizes = [2, 512], strides = [1, 1]} : vector<16x512xf32> to vector<2x512xf32>
    %c0_22 = arith.constant 0 : index
    %c0_23 = arith.constant 0 : index
    %69 = vector.load %arg3[%c0_22, %c0_23] : memref<128x512xf32, #tpu.memory_space<vmem>>, vector<128x512xf32>
    %cst_24 = arith.constant dense<0.000000e+00> : vector<2x512xf32>
    %70 = tpu.matmul %66, %69, %cst_24 {dimension_numbers = #tpu.dot_dimension_numbers<[1], [0], [0], [1], [0, 0, 1, 1], [], []>} : vector<2x128xf32>, vector<128x512xf32>, vector<2x512xf32> -> vector<2x512xf32>
    %71 = arith.addf %68, %70 : vector<2x512xf32>
    %72 = vector.extract_strided_slice %71 {offsets = [0, 0], sizes = [2, 128], strides = [1, 1]} : vector<2x512xf32> to vector<2x128xf32>
    %73 = arith.negf %72 : vector<2x128xf32>
    %74 = math.exp %73 : vector<2x128xf32>
    %cst_25 = arith.constant 1.000000e+00 : f32
    %75 = vector.broadcast %cst_25 : f32 to vector<2x128xf32>
    %76 = arith.addf %75, %74 : vector<2x128xf32>
    %77 = arith.divf %75, %76 : vector<2x128xf32>
    %78 = vector.extract_strided_slice %71 {offsets = [0, 128], sizes = [2, 128], strides = [1, 1]} : vector<2x512xf32> to vector<2x128xf32>
    %79 = arith.negf %78 : vector<2x128xf32>
    %80 = math.exp %79 : vector<2x128xf32>
    %cst_26 = arith.constant 1.000000e+00 : f32
    %81 = vector.broadcast %cst_26 : f32 to vector<2x128xf32>
    %82 = arith.addf %81, %80 : vector<2x128xf32>
    %83 = arith.divf %81, %82 : vector<2x128xf32>
    %84 = vector.extract_strided_slice %71 {offsets = [0, 256], sizes = [2, 128], strides = [1, 1]} : vector<2x512xf32> to vector<2x128xf32>
    %85 = arith.negf %84 : vector<2x128xf32>
    %86 = math.exp %85 : vector<2x128xf32>
    %cst_27 = arith.constant 1.000000e+00 : f32
    %87 = vector.broadcast %cst_27 : f32 to vector<2x128xf32>
    %88 = arith.addf %87, %86 : vector<2x128xf32>
    %89 = arith.divf %87, %88 : vector<2x128xf32>
    %90 = vector.extract_strided_slice %71 {offsets = [0, 384], sizes = [2, 128], strides = [1, 1]} : vector<2x512xf32> to vector<2x128xf32>
    %91 = math.tanh %90 : vector<2x128xf32>
    %92 = arith.mulf %83, %91 : vector<2x128xf32>
    %93 = arith.mulf %77, %64 : vector<2x128xf32>
    %94 = arith.addf %92, %93 : vector<2x128xf32>
    %95 = math.tanh %94 : vector<2x128xf32>
    %96 = arith.mulf %89, %95 : vector<2x128xf32>
    %c4 = arith.constant 4 : index
    %c0_28 = arith.constant 0 : index
    %97 = vector.load %arg8[%c4, %c0_28] : memref<16x128xf32, #tpu.memory_space<vmem>>, vector<2x128xf32>
    tpu.vector_store %arg8[%c4, %c0_28], %96 {strides = array<i32>} : memref<16x128xf32, #tpu.memory_space<vmem>>, vector<2x128xf32>,
    %98 = vector.extract_strided_slice %5 {offsets = [6, 0], sizes = [2, 512], strides = [1, 1]} : vector<16x512xf32> to vector<2x512xf32>
    %c0_29 = arith.constant 0 : index
    %c0_30 = arith.constant 0 : index
    %99 = vector.load %arg3[%c0_29, %c0_30] : memref<128x512xf32, #tpu.memory_space<vmem>>, vector<128x512xf32>
    %cst_31 = arith.constant dense<0.000000e+00> : vector<2x512xf32>
    %100 = tpu.matmul %96, %99, %cst_31 {dimension_numbers = #tpu.dot_dimension_numbers<[1], [0], [0], [1], [0, 0, 1, 1], [], []>} : vector<2x128xf32>, vector<128x512xf32>, vector<2x512xf32> -> vector<2x512xf32>
    %101 = arith.addf %98, %100 : vector<2x512xf32>
    %102 = vector.extract_strided_slice %101 {offsets = [0, 0], sizes = [2, 128], strides = [1, 1]} : vector<2x512xf32> to vector<2x128xf32>
    %103 = arith.negf %102 : vector<2x128xf32>
    %104 = math.exp %103 : vector<2x128xf32>
    %cst_32 = arith.constant 1.000000e+00 : f32
    %105 = vector.broadcast %cst_32 : f32 to vector<2x128xf32>
    %106 = arith.addf %105, %104 : vector<2x128xf32>
    %107 = arith.divf %105, %106 : vector<2x128xf32>
    %108 = vector.extract_strided_slice %101 {offsets = [0, 128], sizes = [2, 128], strides = [1, 1]} : vector<2x512xf32> to vector<2x128xf32>
    %109 = arith.negf %108 : vector<2x128xf32>
    %110 = math.exp %109 : vector<2x128xf32>
    %cst_33 = arith.constant 1.000000e+00 : f32
    %111 = vector.broadcast %cst_33 : f32 to vector<2x128xf32>
    %112 = arith.addf %111, %110 : vector<2x128xf32>
    %113 = arith.divf %111, %112 : vector<2x128xf32>
    %114 = vector.extract_strided_slice %101 {offsets = [0, 256], sizes = [2, 128], strides = [1, 1]} : vector<2x512xf32> to vector<2x128xf32>
    %115 = arith.negf %114 : vector<2x128xf32>
    %116 = math.exp %115 : vector<2x128xf32>
    %cst_34 = arith.constant 1.000000e+00 : f32
    %117 = vector.broadcast %cst_34 : f32 to vector<2x128xf32>
    %118 = arith.addf %117, %116 : vector<2x128xf32>
    %119 = arith.divf %117, %118 : vector<2x128xf32>
    %120 = vector.extract_strided_slice %101 {offsets = [0, 384], sizes = [2, 128], strides = [1, 1]} : vector<2x512xf32> to vector<2x128xf32>
    %121 = math.tanh %120 : vector<2x128xf32>
    %122 = arith.mulf %113, %121 : vector<2x128xf32>
    %123 = arith.mulf %107, %94 : vector<2x128xf32>
    %124 = arith.addf %122, %123 : vector<2x128xf32>
    %125 = math.tanh %124 : vector<2x128xf32>
    %126 = arith.mulf %119, %125 : vector<2x128xf32>
    %c6 = arith.constant 6 : index
    %c0_35 = arith.constant 0 : index
    %127 = vector.load %arg8[%c6, %c0_35] : memref<16x128xf32, #tpu.memory_space<vmem>>, vector<2x128xf32>
    tpu.vector_store %arg8[%c6, %c0_35], %126 {strides = array<i32>} : memref<16x128xf32, #tpu.memory_space<vmem>>, vector<2x128xf32>,
    %128 = vector.extract_strided_slice %5 {offsets = [8, 0], sizes = [2, 512], strides = [1, 1]} : vector<16x512xf32> to vector<2x512xf32>
    %c0_36 = arith.constant 0 : index
    %c0_37 = arith.constant 0 : index
    %129 = vector.load %arg3[%c0_36, %c0_37] : memref<128x512xf32, #tpu.memory_space<vmem>>, vector<128x512xf32>
    %cst_38 = arith.constant dense<0.000000e+00> : vector<2x512xf32>
    %130 = tpu.matmul %126, %129, %cst_38 {dimension_numbers = #tpu.dot_dimension_numbers<[1], [0], [0], [1], [0, 0, 1, 1], [], []>} : vector<2x128xf32>, vector<128x512xf32>, vector<2x512xf32> -> vector<2x512xf32>
    %131 = arith.addf %128, %130 : vector<2x512xf32>
    %132 = vector.extract_strided_slice %131 {offsets = [0, 0], sizes = [2, 128], strides = [1, 1]} : vector<2x512xf32> to vector<2x128xf32>
    %133 = arith.negf %132 : vector<2x128xf32>
    %134 = math.exp %133 : vector<2x128xf32>
    %cst_39 = arith.constant 1.000000e+00 : f32
    %135 = vector.broadcast %cst_39 : f32 to vector<2x128xf32>
    %136 = arith.addf %135, %134 : vector<2x128xf32>
    %137 = arith.divf %135, %136 : vector<2x128xf32>
    %138 = vector.extract_strided_slice %131 {offsets = [0, 128], sizes = [2, 128], strides = [1, 1]} : vector<2x512xf32> to vector<2x128xf32>
    %139 = arith.negf %138 : vector<2x128xf32>
    %140 = math.exp %139 : vector<2x128xf32>
    %cst_40 = arith.constant 1.000000e+00 : f32
    %141 = vector.broadcast %cst_40 : f32 to vector<2x128xf32>
    %142 = arith.addf %141, %140 : vector<2x128xf32>
    %143 = arith.divf %141, %142 : vector<2x128xf32>
    %144 = vector.extract_strided_slice %131 {offsets = [0, 256], sizes = [2, 128], strides = [1, 1]} : vector<2x512xf32> to vector<2x128xf32>
    %145 = arith.negf %144 : vector<2x128xf32>
    %146 = math.exp %145 : vector<2x128xf32>
    %cst_41 = arith.constant 1.000000e+00 : f32
    %147 = vector.broadcast %cst_41 : f32 to vector<2x128xf32>
    %148 = arith.addf %147, %146 : vector<2x128xf32>
    %149 = arith.divf %147, %148 : vector<2x128xf32>
    %150 = vector.extract_strided_slice %131 {offsets = [0, 384], sizes = [2, 128], strides = [1, 1]} : vector<2x512xf32> to vector<2x128xf32>
    %151 = math.tanh %150 : vector<2x128xf32>
    %152 = arith.mulf %143, %151 : vector<2x128xf32>
    %153 = arith.mulf %137, %124 : vector<2x128xf32>
    %154 = arith.addf %152, %153 : vector<2x128xf32>
    %155 = math.tanh %154 : vector<2x128xf32>
    %156 = arith.mulf %149, %155 : vector<2x128xf32>
    %c8 = arith.constant 8 : index
    %c0_42 = arith.constant 0 : index
    %157 = vector.load %arg8[%c8, %c0_42] : memref<16x128xf32, #tpu.memory_space<vmem>>, vector<2x128xf32>
    tpu.vector_store %arg8[%c8, %c0_42], %156 {strides = array<i32>} : memref<16x128xf32, #tpu.memory_space<vmem>>, vector<2x128xf32>,
    %158 = vector.extract_strided_slice %5 {offsets = [10, 0], sizes = [2, 512], strides = [1, 1]} : vector<16x512xf32> to vector<2x512xf32>
    %c0_43 = arith.constant 0 : index
    %c0_44 = arith.constant 0 : index
    %159 = vector.load %arg3[%c0_43, %c0_44] : memref<128x512xf32, #tpu.memory_space<vmem>>, vector<128x512xf32>
    %cst_45 = arith.constant dense<0.000000e+00> : vector<2x512xf32>
    %160 = tpu.matmul %156, %159, %cst_45 {dimension_numbers = #tpu.dot_dimension_numbers<[1], [0], [0], [1], [0, 0, 1, 1], [], []>} : vector<2x128xf32>, vector<128x512xf32>, vector<2x512xf32> -> vector<2x512xf32>
    %161 = arith.addf %158, %160 : vector<2x512xf32>
    %162 = vector.extract_strided_slice %161 {offsets = [0, 0], sizes = [2, 128], strides = [1, 1]} : vector<2x512xf32> to vector<2x128xf32>
    %163 = arith.negf %162 : vector<2x128xf32>
    %164 = math.exp %163 : vector<2x128xf32>
    %cst_46 = arith.constant 1.000000e+00 : f32
    %165 = vector.broadcast %cst_46 : f32 to vector<2x128xf32>
    %166 = arith.addf %165, %164 : vector<2x128xf32>
    %167 = arith.divf %165, %166 : vector<2x128xf32>
    %168 = vector.extract_strided_slice %161 {offsets = [0, 128], sizes = [2, 128], strides = [1, 1]} : vector<2x512xf32> to vector<2x128xf32>
    %169 = arith.negf %168 : vector<2x128xf32>
    %170 = math.exp %169 : vector<2x128xf32>
    %cst_47 = arith.constant 1.000000e+00 : f32
    %171 = vector.broadcast %cst_47 : f32 to vector<2x128xf32>
    %172 = arith.addf %171, %170 : vector<2x128xf32>
    %173 = arith.divf %171, %172 : vector<2x128xf32>
    %174 = vector.extract_strided_slice %161 {offsets = [0, 256], sizes = [2, 128], strides = [1, 1]} : vector<2x512xf32> to vector<2x128xf32>
    %175 = arith.negf %174 : vector<2x128xf32>
    %176 = math.exp %175 : vector<2x128xf32>
    %cst_48 = arith.constant 1.000000e+00 : f32
    %177 = vector.broadcast %cst_48 : f32 to vector<2x128xf32>
    %178 = arith.addf %177, %176 : vector<2x128xf32>
    %179 = arith.divf %177, %178 : vector<2x128xf32>
    %180 = vector.extract_strided_slice %161 {offsets = [0, 384], sizes = [2, 128], strides = [1, 1]} : vector<2x512xf32> to vector<2x128xf32>
    %181 = math.tanh %180 : vector<2x128xf32>
    %182 = arith.mulf %173, %181 : vector<2x128xf32>
    %183 = arith.mulf %167, %154 : vector<2x128xf32>
    %184 = arith.addf %182, %183 : vector<2x128xf32>
    %185 = math.tanh %184 : vector<2x128xf32>
    %186 = arith.mulf %179, %185 : vector<2x128xf32>
    %c10 = arith.constant 10 : index
    %c0_49 = arith.constant 0 : index
    %187 = vector.load %arg8[%c10, %c0_49] : memref<16x128xf32, #tpu.memory_space<vmem>>, vector<2x128xf32>
    tpu.vector_store %arg8[%c10, %c0_49], %186 {strides = array<i32>} : memref<16x128xf32, #tpu.memory_space<vmem>>, vector<2x128xf32>,
    %188 = vector.extract_strided_slice %5 {offsets = [12, 0], sizes = [2, 512], strides = [1, 1]} : vector<16x512xf32> to vector<2x512xf32>
    %c0_50 = arith.constant 0 : index
    %c0_51 = arith.constant 0 : index
    %189 = vector.load %arg3[%c0_50, %c0_51] : memref<128x512xf32, #tpu.memory_space<vmem>>, vector<128x512xf32>
    %cst_52 = arith.constant dense<0.000000e+00> : vector<2x512xf32>
    %190 = tpu.matmul %186, %189, %cst_52 {dimension_numbers = #tpu.dot_dimension_numbers<[1], [0], [0], [1], [0, 0, 1, 1], [], []>} : vector<2x128xf32>, vector<128x512xf32>, vector<2x512xf32> -> vector<2x512xf32>
    %191 = arith.addf %188, %190 : vector<2x512xf32>
    %192 = vector.extract_strided_slice %191 {offsets = [0, 0], sizes = [2, 128], strides = [1, 1]} : vector<2x512xf32> to vector<2x128xf32>
    %193 = arith.negf %192 : vector<2x128xf32>
    %194 = math.exp %193 : vector<2x128xf32>
    %cst_53 = arith.constant 1.000000e+00 : f32
    %195 = vector.broadcast %cst_53 : f32 to vector<2x128xf32>
    %196 = arith.addf %195, %194 : vector<2x128xf32>
    %197 = arith.divf %195, %196 : vector<2x128xf32>
    %198 = vector.extract_strided_slice %191 {offsets = [0, 128], sizes = [2, 128], strides = [1, 1]} : vector<2x512xf32> to vector<2x128xf32>
    %199 = arith.negf %198 : vector<2x128xf32>
    %200 = math.exp %199 : vector<2x128xf32>
    %cst_54 = arith.constant 1.000000e+00 : f32
    %201 = vector.broadcast %cst_54 : f32 to vector<2x128xf32>
    %202 = arith.addf %201, %200 : vector<2x128xf32>
    %203 = arith.divf %201, %202 : vector<2x128xf32>
    %204 = vector.extract_strided_slice %191 {offsets = [0, 256], sizes = [2, 128], strides = [1, 1]} : vector<2x512xf32> to vector<2x128xf32>
    %205 = arith.negf %204 : vector<2x128xf32>
    %206 = math.exp %205 : vector<2x128xf32>
    %cst_55 = arith.constant 1.000000e+00 : f32
    %207 = vector.broadcast %cst_55 : f32 to vector<2x128xf32>
    %208 = arith.addf %207, %206 : vector<2x128xf32>
    %209 = arith.divf %207, %208 : vector<2x128xf32>
    %210 = vector.extract_strided_slice %191 {offsets = [0, 384], sizes = [2, 128], strides = [1, 1]} : vector<2x512xf32> to vector<2x128xf32>
    %211 = math.tanh %210 : vector<2x128xf32>
    %212 = arith.mulf %203, %211 : vector<2x128xf32>
    %213 = arith.mulf %197, %184 : vector<2x128xf32>
    %214 = arith.addf %212, %213 : vector<2x128xf32>
    %215 = math.tanh %214 : vector<2x128xf32>
    %216 = arith.mulf %209, %215 : vector<2x128xf32>
    %c12 = arith.constant 12 : index
    %c0_56 = arith.constant 0 : index
    %217 = vector.load %arg8[%c12, %c0_56] : memref<16x128xf32, #tpu.memory_space<vmem>>, vector<2x128xf32>
    tpu.vector_store %arg8[%c12, %c0_56], %216 {strides = array<i32>} : memref<16x128xf32, #tpu.memory_space<vmem>>, vector<2x128xf32>,
    %218 = vector.extract_strided_slice %5 {offsets = [14, 0], sizes = [2, 512], strides = [1, 1]} : vector<16x512xf32> to vector<2x512xf32>
    %c0_57 = arith.constant 0 : index
    %c0_58 = arith.constant 0 : index
    %219 = vector.load %arg3[%c0_57, %c0_58] : memref<128x512xf32, #tpu.memory_space<vmem>>, vector<128x512xf32>
    %cst_59 = arith.constant dense<0.000000e+00> : vector<2x512xf32>
    %220 = tpu.matmul %216, %219, %cst_59 {dimension_numbers = #tpu.dot_dimension_numbers<[1], [0], [0], [1], [0, 0, 1, 1], [], []>} : vector<2x128xf32>, vector<128x512xf32>, vector<2x512xf32> -> vector<2x512xf32>
    %221 = arith.addf %218, %220 : vector<2x512xf32>
    %222 = vector.extract_strided_slice %221 {offsets = [0, 0], sizes = [2, 128], strides = [1, 1]} : vector<2x512xf32> to vector<2x128xf32>
    %223 = arith.negf %222 : vector<2x128xf32>
    %224 = math.exp %223 : vector<2x128xf32>
    %cst_60 = arith.constant 1.000000e+00 : f32
    %225 = vector.broadcast %cst_60 : f32 to vector<2x128xf32>
    %226 = arith.addf %225, %224 : vector<2x128xf32>
    %227 = arith.divf %225, %226 : vector<2x128xf32>
    %228 = vector.extract_strided_slice %221 {offsets = [0, 128], sizes = [2, 128], strides = [1, 1]} : vector<2x512xf32> to vector<2x128xf32>
    %229 = arith.negf %228 : vector<2x128xf32>
    %230 = math.exp %229 : vector<2x128xf32>
    %cst_61 = arith.constant 1.000000e+00 : f32
    %231 = vector.broadcast %cst_61 : f32 to vector<2x128xf32>
    %232 = arith.addf %231, %230 : vector<2x128xf32>
    %233 = arith.divf %231, %232 : vector<2x128xf32>
    %234 = vector.extract_strided_slice %221 {offsets = [0, 256], sizes = [2, 128], strides = [1, 1]} : vector<2x512xf32> to vector<2x128xf32>
    %235 = arith.negf %234 : vector<2x128xf32>
    %236 = math.exp %235 : vector<2x128xf32>
    %cst_62 = arith.constant 1.000000e+00 : f32
    %237 = vector.broadcast %cst_62 : f32 to vector<2x128xf32>
    %238 = arith.addf %237, %236 : vector<2x128xf32>
    %239 = arith.divf %237, %238 : vector<2x128xf32>
    %240 = vector.extract_strided_slice %221 {offsets = [0, 384], sizes = [2, 128], strides = [1, 1]} : vector<2x512xf32> to vector<2x128xf32>
    %241 = math.tanh %240 : vector<2x128xf32>
    %242 = arith.mulf %233, %241 : vector<2x128xf32>
    %243 = arith.mulf %227, %214 : vector<2x128xf32>
    %244 = arith.addf %242, %243 : vector<2x128xf32>
    %245 = math.tanh %244 : vector<2x128xf32>
    %246 = arith.mulf %239, %245 : vector<2x128xf32>
    %c14 = arith.constant 14 : index
    %c0_63 = arith.constant 0 : index
    %247 = vector.load %arg8[%c14, %c0_63] : memref<16x128xf32, #tpu.memory_space<vmem>>, vector<2x128xf32>
    tpu.vector_store %arg8[%c14, %c0_63], %246 {strides = array<i32>} : memref<16x128xf32, #tpu.memory_space<vmem>>, vector<2x128xf32>,
    %c0_64 = arith.constant 0 : index
    %c0_65 = arith.constant 0 : index
    %248 = vector.load %arg8[%c0_64, %c0_65] : memref<16x128xf32, #tpu.memory_space<vmem>>, vector<16x128xf32>
    %c0_66 = arith.constant 0 : index
    %c0_67 = arith.constant 0 : index
    %249 = vector.load %arg4[%c0_66, %c0_67] : memref<128x128xf32, #tpu.memory_space<vmem>>, vector<128x128xf32>
    %cst_68 = arith.constant dense<0.000000e+00> : vector<16x128xf32>
    %250 = tpu.matmul %248, %249, %cst_68 {dimension_numbers = #tpu.dot_dimension_numbers<[1], [0], [0], [1], [0, 0, 1, 1], [], []>} : vector<16x128xf32>, vector<128x128xf32>, vector<16x128xf32> -> vector<16x128xf32>
    %c0_69 = arith.constant 0 : index
    %c0_70 = arith.constant 0 : index
    %251 = vector.load %arg5[%c0_69, %c0_70] : memref<1x128xf32, #tpu.memory_space<vmem>>, vector<1x128xf32>
    %252 = vector.broadcast %251 : vector<1x128xf32> to vector<16x128xf32>
    %253 = arith.addf %250, %252 : vector<16x128xf32>
    %254 = arith.mulf %253, %253 : vector<16x128xf32>
    %c0_71 = arith.constant 0 : index
    %c0_72 = arith.constant 0 : index
    %255 = vector.load %arg6[%c0_71, %c0_72] : memref<128x128xf32, #tpu.memory_space<vmem>>, vector<128x128xf32>
    %cst_73 = arith.constant dense<0.000000e+00> : vector<16x128xf32>
    %256 = tpu.matmul %254, %255, %cst_73 {dimension_numbers = #tpu.dot_dimension_numbers<[1], [0], [0], [1], [0, 0, 1, 1], [], []>} : vector<16x128xf32>, vector<128x128xf32>, vector<16x128xf32> -> vector<16x128xf32>
    %cst_74 = arith.constant 9.99999996E-13 : f32
    %257 = vector.broadcast %cst_74 : f32 to vector<16x128xf32>
    %258 = arith.addf %256, %257 : vector<16x128xf32>
    %259 = math.rsqrt %258 : vector<16x128xf32>
    %260 = arith.mulf %253, %259 : vector<16x128xf32>
    %c0_75 = arith.constant 0 : index
    %c0_76 = arith.constant 0 : index
    %261 = vector.load %arg7[%c0_75, %c0_76] : memref<16x128xf32, #tpu.memory_space<vmem>>, vector<16x128xf32>
    tpu.vector_store %arg7[%c0_75, %c0_76], %260 {strides = array<i32>} : memref<16x128xf32, #tpu.memory_space<vmem>>, vector<16x128xf32>,
    return
  }
}

</mosaic_0001>

<llo_original>
// kernel: tpu_custom_call.1
$region0: #{tpu_custom_call.1}
  #allocation0 [shape = 'u32[]', space=smem, size = 0x4, offset = 0x4, fixed_abs, tag = 'smem constant byte address 0x4 - core index']
  #allocation1 [shape = 'u32[144,128]{1,0:T(1,128)}', space=vmem, size = 0x12000, scoped, tag = 'internal scratch']
  #allocation2 [shape = 'f32[16,128]{1,0:T(8,128)}', space=vmem, size = 0x2000, scoped, tag = 'scratch operand']
  %s0 = inlined_call_operand.vmem [shape: f32[16,4], index: 0, kind: input, shape index: {}]
  %s1 = inlined_call_operand.vmem [shape: f32[4,512], index: 1, kind: input, shape index: {}]
  %s2 = inlined_call_operand.vmem [shape: f32[1,512], index: 2, kind: input, shape index: {}]
  %s3 = inlined_call_operand.hbm [shape: f32[128,512], index: 3, kind: input, shape index: {}]
  %s4 = inlined_call_operand.hbm [shape: f32[128,128], index: 4, kind: input, shape index: {}]
  %s5 = inlined_call_operand.vmem [shape: f32[1,128], index: 5, kind: input, shape index: {}]
  %s6 = inlined_call_operand.hbm [shape: f32[128,128], index: 6, kind: input, shape index: {}]
  %s7 = inlined_call_operand.hbm [shape: f32[16,128], index: 7, kind: output, shape index: {}]
  %s8 = sld [smem:[#allocation0]]
  $region50: #{tpu_custom_call.1} parent=0
    _
  %s10 = ssub.s32 1, %s8
  %s11 = scalar_select 0, %s10, %s8
  $region1: #{tpu_custom_call.1} parent=0
    #allocation3 [shape = 'u8[262144]{0}', space=vmem, size = 0x40000, scoped, tag = 'input window, operand 3, single buffered']
    #allocation4 [shape = 's32[1]{0}', space=sflag, size = 0x4, scoped, tag = 'scoped memory for tpu_custom_call.1']
    #allocation5 [shape = 's32[1]{0}', space=sflag, size = 0x4, scoped, tag = 'scoped memory for tpu_custom_call.1']
    #allocation6 [shape = 'u8[65536]{0}', space=vmem, size = 0x10000, scoped, tag = 'input window, operand 4, single buffered']
    #allocation7 [shape = 's32[1]{0}', space=sflag, size = 0x4, scoped, tag = 'scoped memory for tpu_custom_call.1']
    #allocation8 [shape = 'u8[65536]{0}', space=vmem, size = 0x10000, scoped, tag = 'input window, operand 6, single buffered']
    #allocation9 [shape = 'u8[8192]{0}', space=vmem, size = 0x2000, scoped, tag = 'output window, operand 0, single buffered']
    %12 = vsyncpa [#allocation4], 0
    %13 = vsyncpa [#allocation7], 0
    %14 = vsyncpa [#allocation5], 0
    // Predicated region
    $region2: #{tpu_custom_call.1} parent=1 // pred_check
      _
    $region3: #{tpu_custom_call.1} parent=1 // pred_check_branch
      %16 = sbr.rel (0) target = $region5
    $region4: #{tpu_custom_call.1} parent=1 // pred_region
      _
    $region5: #{tpu_custom_call.1} parent=1 // pred_fallthru
      _
    // Predicated region
    $region6: #{tpu_custom_call.1} parent=1 // pred_check
      _
    $region7: #{tpu_custom_call.1} parent=1 // pred_check_branch
      %18 = sbr.rel (0) target = $region9
    $region8: #{tpu_custom_call.1} parent=1 // pred_region
      _
    $region9: #{tpu_custom_call.1} parent=1 // pred_fallthru
      _
    // Predicated region
    $region10: #{tpu_custom_call.1} parent=1 // pred_check
      _
    $region11: #{tpu_custom_call.1} parent=1 // pred_check_branch
      %20 = sbr.rel (0) target = $region13
    $region12: #{tpu_custom_call.1} parent=1 // pred_region
      _
    $region13: #{tpu_custom_call.1} parent=1 // pred_fallthru
      _
    // Predicated region
    $region14: #{tpu_custom_call.1} parent=1 // pred_check
      _
    $region15: #{tpu_custom_call.1} parent=1 // pred_check_branch
      %22 = sbr.rel (0) target = $region17
    $region16: #{tpu_custom_call.1} parent=1 // pred_region
      %s24 = ssub.s32 8192, 8192
      %25 = vsyncadd [#allocation4], %s24
      %s26 = sshll.u32 [#allocation3], 4
      %s27 = int_to_ptr.vmem [resolvable:$true] %s26
      %32 = dma.hbm_to_vmem [thread:$0]  %s3, 8192, %s27, [#allocation4], 512, 512, 32
    $region17: #{tpu_custom_call.1} parent=1 // pred_fallthru
      _
    // Predicated region
    $region18: #{tpu_custom_call.1} parent=1 // pred_check
      _
    $region19: #{tpu_custom_call.1} parent=1 // pred_check_branch
      %34 = sbr.rel (0) target = $region21
    $region20: #{tpu_custom_call.1} parent=1 // pred_region
      %s36 = ssub.s32 2048, 2048
      %37 = vsyncadd [#allocation7], %s36
      %s38 = sshll.u32 [#allocation6], 4
      %s39 = int_to_ptr.vmem [resolvable:$true] %s38
      %44 = dma.hbm_to_vmem [thread:$0]  %s4, 2048, %s39, [#allocation7], 128, 128, 8
    $region21: #{tpu_custom_call.1} parent=1 // pred_fallthru
      _
    // Predicated region
    $region22: #{tpu_custom_call.1} parent=1 // pred_check
      _
    $region23: #{tpu_custom_call.1} parent=1 // pred_check_branch
      %46 = sbr.rel (0) target = $region25
    $region24: #{tpu_custom_call.1} parent=1 // pred_region
      _
    $region25: #{tpu_custom_call.1} parent=1 // pred_fallthru
      _
    // Predicated region
    $region26: #{tpu_custom_call.1} parent=1 // pred_check
      _
    $region27: #{tpu_custom_call.1} parent=1 // pred_check_branch
      %48 = sbr.rel (0) target = $region29
    $region28: #{tpu_custom_call.1} parent=1 // pred_region
      %s50 = ssub.s32 2048, 2048
      %51 = vsyncadd [#allocation7], %s50
      %s52 = sshll.u32 [#allocation8], 4
      %s53 = int_to_ptr.vmem [resolvable:$true] %s52
      %58 = dma.hbm_to_vmem [thread:$0]  %s6, 2048, %s53, [#allocation7], 128, 128, 8
    $region29: #{tpu_custom_call.1} parent=1 // pred_fallthru
      _
    // Predicated region
    $region30: #{tpu_custom_call.1} parent=1 // pred_check
      _
    $region31: #{tpu_custom_call.1} parent=1 // pred_check_branch
      %60 = sbr.rel (0) target = $region33
    $region32: #{tpu_custom_call.1} parent=1 // pred_region
      %61 = dma.done [#allocation4], 8192
    $region33: #{tpu_custom_call.1} parent=1 // pred_fallthru
      _
    // Predicated region
    $region34: #{tpu_custom_call.1} parent=1 // pred_check
      _
    $region35: #{tpu_custom_call.1} parent=1 // pred_check_branch
      %63 = sbr.rel (0) target = $region37
    $region36: #{tpu_custom_call.1} parent=1 // pred_region
      %64 = dma.done [#allocation7], 2048
    $region37: #{tpu_custom_call.1} parent=1 // pred_fallthru
      _
    // Predicated region
    $region38: #{tpu_custom_call.1} parent=1 // pred_check
      _
    $region39: #{tpu_custom_call.1} parent=1 // pred_check_branch
      %66 = sbr.rel (0) target = $region41
    $region40: #{tpu_custom_call.1} parent=1 // pred_region
      %67 = dma.done [#allocation7], 2048
    $region41: #{tpu_custom_call.1} parent=1 // pred_fallthru
      _
    %v68 = vld [vmem:[%s0] sm:$0xff]
    %v69 = vld [vmem:[%s0 + $0x8] sm:$0xff]
    %v70 = vld [vmem:[%s1] sm:$0xff]
    %v71 = vld [vmem:[%s1 + $0x8] sm:$0xff]
    %v72 = vld [vmem:[%s2] sm:$0xf]
    %v74 = vlaneseq
    %v75 = vshrl.u32 %v74, 7
    %v76 = vsub.s32 0, %v75
    %v77 = vrot.slane %v72, %v76
    %v78 = vlaneseq
    %v79 = vshrl.u32 %v78, 7
    %v80 = vsub.s32 1, %v79
    %v81 = vrot.slane %v72, %v80
    %v82 = vlaneseq
    %v83 = vshrl.u32 %v82, 7
    %v84 = vsub.s32 2, %v83
    %v85 = vrot.slane %v72, %v84
    %v86 = vlaneseq
    %v87 = vshrl.u32 %v86, 7
    %v88 = vsub.s32 3, %v87
    %v89 = vrot.slane %v72, %v88
    %v96 = vcombine.high %v70, %v70
    %v97 = vcombine.high %v71, %v71
    %vm98 = vcmask 31744
    %v100 = vsel %vm98, %v68, 0
    %v103 = vsel %vm98, %v69, 0
    %vm105 = vcmask 1043456
    %v106 = vsel %vm105, %v70, 0
    %v108 = vsel %vm105, %v96, 0
    %v110 = vsel %vm105, %v71, 0
    %v112 = vsel %vm105, %v97, 0
    %114 = vmatprep.subr.mxu0 0.0
    %115 = vmatpush1.msra.mxu0 0.0
    %116 = vmatprep.subr.mxu0 0.0
    %117 = vmatpush1.msra.mxu0 0.0
    %118 = vmatprep.subr.mxu0 0.0
    %119 = vmatpush1.msra.mxu0 0.0
    %120 = vmatprep.subr.mxu0 0.0
    %121 = vmatpush1.msra.mxu0 0.0
    %122 = vmatprep.subr.mxu0 0.0
    %123 = vmatpush1.msra.mxu0 0.0
    %124 = vmatprep.subr.mxu0 0.0
    %125 = vmatpush1.msra.mxu0 0.0
    %126 = vmatprep.subr.mxu0 0.0
    %127 = vmatpush1.msra.mxu0 0.0
    %128 = vmatprep.subr.mxu0 0.0
    %129 = vmatpush1.msra.mxu0 0.0
    %130 = vmatprep.subr.mxu0 0.0
    %131 = vmatpush1.msra.mxu0 0.0
    %132 = vmatprep.subr.mxu0 0.0
    %133 = vmatpush1.msra.mxu0 0.0
    %134 = vmatprep.subr.mxu0 0.0
    %135 = vmatpush1.msra.mxu0 0.0
    %136 = vmatprep.subr.mxu0 0.0
    %137 = vmatpush1.msra.mxu0 0.0
    %138 = vmatprep.subr.mxu0 0.0
    %139 = vmatpush1.msra.mxu0 0.0
    %140 = vmatprep.subr.mxu0 0.0
    %141 = vmatpush1.msra.mxu0 0.0
    %142 = vmatprep.subr.mxu0 0.0
    %143 = vmatpush1.msra.mxu0 0.0
    %144 = vmatprep.subr.mxu0 %v108
    %145 = vmatpush1.msra.mxu0 %v106
    %146 = vmatprep.subr.mxu0 0.0
    %147 = vmatpush2.msra.mxu0 0.0
    %148 = vmatprep.subr.mxu0 0.0
    %149 = vmatpush2.msra.mxu0 0.0
    %150 = vmatprep.subr.mxu0 0.0
    %151 = vmatpush2.msra.mxu0 0.0
    %152 = vmatprep.subr.mxu0 0.0
    %153 = vmatpush2.msra.mxu0 0.0
    %154 = vmatprep.subr.mxu0 0.0
    %155 = vmatpush2.msra.mxu0 0.0
    %156 = vmatprep.subr.mxu0 0.0
    %157 = vmatpush2.msra.mxu0 0.0
    %158 = vmatprep.subr.mxu0 0.0
    %159 = vmatpush2.msra.mxu0 0.0
    %160 = vmatprep.subr.mxu0 0.0
    %161 = vmatpush2.msra.mxu0 0.0
    %162 = vmatprep.subr.mxu0 0.0
    %163 = vmatpush2.msra.mxu0 0.0
    %164 = vmatprep.subr.mxu0 0.0
    %165 = vmatpush2.msra.mxu0 0.0
    %166 = vmatprep.subr.mxu0 0.0
    %167 = vmatpush2.msra.mxu0 0.0
    %168 = vmatprep.subr.mxu0 0.0
    %169 = vmatpush2.msra.mxu0 0.0
    %170 = vmatprep.subr.mxu0 0.0
    %171 = vmatpush2.msra.mxu0 0.0
    %172 = vmatprep.subr.mxu0 0.0
    %173 = vmatpush2.msra.mxu0 0.0
    %174 = vmatprep.subr.mxu0 0.0
    %175 = vmatpush2.msra.mxu0 0.0
    %176 = vmatprep.subr.mxu0 0.0
    %177 = vmatpush2.msra.mxu0 0.0
    %178 = vmatprep.mubr.f32.mxu0 0.0
    %179 = vmatmul.mubr.f32.gmra.mxu0 %v100
    %v180 = vpop.f32.mrf.mxu0
    %v181 = vadd.f32 %v77, %v180
    %v182 = vpop.f32.mrf.mxu0
    %v183 = vadd.f32 %v81, %v182
    %184 = vmatprep.mubr.f32.mxu0 0.0
    %185 = vmatmul.mubr.f32.gmra.mxu0 %v103
    %v186 = vpop.f32.mrf.mxu0
    %v187 = vadd.f32 %v77, %v186
    %v188 = vpop.f32.mrf.mxu0
    %v189 = vadd.f32 %v81, %v188
    %190 = vdwg.mxu0
    %191 = vmatprep.subr.mxu0 0.0
    %192 = vmatpush1.msra.mxu0 0.0
    %193 = vmatprep.subr.mxu0 0.0
    %194 = vmatpush1.msra.mxu0 0.0
    %195 = vmatprep.subr.mxu0 0.0
    %196 = vmatpush1.msra.mxu0 0.0
    %197 = vmatprep.subr.mxu0 0.0
    %198 = vmatpush1.msra.mxu0 0.0
    %199 = vmatprep.subr.mxu0 0.0
    %200 = vmatpush1.msra.mxu0 0.0
    %201 = vmatprep.subr.mxu0 0.0
    %202 = vmatpush1.msra.mxu0 0.0
    %203 = vmatprep.subr.mxu0 0.0
    %204 = vmatpush1.msra.mxu0 0.0
    %205 = vmatprep.subr.mxu0 0.0
    %206 = vmatpush1.msra.mxu0 0.0
    %207 = vmatprep.subr.mxu0 0.0
    %208 = vmatpush1.msra.mxu0 0.0
    %209 = vmatprep.subr.mxu0 0.0
    %210 = vmatpush1.msra.mxu0 0.0
    %211 = vmatprep.subr.mxu0 0.0
    %212 = vmatpush1.msra.mxu0 0.0
    %213 = vmatprep.subr.mxu0 0.0
    %214 = vmatpush1.msra.mxu0 0.0
    %215 = vmatprep.subr.mxu0 0.0
    %216 = vmatpush1.msra.mxu0 0.0
    %217 = vmatprep.subr.mxu0 0.0
    %218 = vmatpush1.msra.mxu0 0.0
    %219 = vmatprep.subr.mxu0 0.0
    %220 = vmatpush1.msra.mxu0 0.0
    %221 = vmatprep.subr.mxu0 %v112
    %222 = vmatpush1.msra.mxu0 %v110
    %223 = vmatprep.subr.mxu0 0.0
    %224 = vmatpush2.msra.mxu0 0.0
    %225 = vmatprep.subr.mxu0 0.0
    %226 = vmatpush2.msra.mxu0 0.0
    %227 = vmatprep.subr.mxu0 0.0
    %228 = vmatpush2.msra.mxu0 0.0
    %229 = vmatprep.subr.mxu0 0.0
    %230 = vmatpush2.msra.mxu0 0.0
    %231 = vmatprep.subr.mxu0 0.0
    %232 = vmatpush2.msra.mxu0 0.0
    %233 = vmatprep.subr.mxu0 0.0
    %234 = vmatpush2.msra.mxu0 0.0
    %235 = vmatprep.subr.mxu0 0.0
    %236 = vmatpush2.msra.mxu0 0.0
    %237 = vmatprep.subr.mxu0 0.0
    %238 = vmatpush2.msra.mxu0 0.0
    %239 = vmatprep.subr.mxu0 0.0
    %240 = vmatpush2.msra.mxu0 0.0
    %241 = vmatprep.subr.mxu0 0.0
    %242 = vmatpush2.msra.mxu0 0.0
    %243 = vmatprep.subr.mxu0 0.0
    %244 = vmatpush2.msra.mxu0 0.0
    %245 = vmatprep.subr.mxu0 0.0
    %246 = vmatpush2.msra.mxu0 0.0
    %247 = vmatprep.subr.mxu0 0.0
    %248 = vmatpush2.msra.mxu0 0.0
    %249 = vmatprep.subr.mxu0 0.0
    %250 = vmatpush2.msra.mxu0 0.0
    %251 = vmatprep.subr.mxu0 0.0
    %252 = vmatpush2.msra.mxu0 0.0
    %253 = vmatprep.subr.mxu0 0.0
    %254 = vmatpush2.msra.mxu0 0.0
    %255 = vmatprep.mubr.f32.mxu0 0.0
    %256 = vmatmul.mubr.f32.gmra.mxu0 %v100
    %v257 = vpop.f32.mrf.mxu0
    %v258 = vadd.f32 %v85, %v257
    %v259 = vpop.f32.mrf.mxu0
    %v260 = vadd.f32 %v89, %v259
    %261 = vmatprep.mubr.f32.mxu0 0.0
    %262 = vmatmul.mubr.f32.gmra.mxu0 %v103
    %v263 = vpop.f32.mrf.mxu0
    %v264 = vadd.f32 %v85, %v263
    %v265 = vpop.f32.mrf.mxu0
    %v266 = vadd.f32 %v89, %v265
    %267 = vdwg.mxu0
    %v268 = vld [vmem:[#allocation3] sm:$0xff]
    %v269 = vld [vmem:[#allocation3 + $0x8] sm:$0xff]
    %v270 = vld [vmem:[#allocation3 + $0x10] sm:$0xff]
    %v271 = vld [vmem:[#allocation3 + $0x18] sm:$0xff]
    %v272 = vld [vmem:[#allocation3 + $0x20] sm:$0xff]
    %v273 = vld [vmem:[#allocation3 + $0x28] sm:$0xff]
    %v274 = vld [vmem:[#allocation3 + $0x30] sm:$0xff]
    %v275 = vld [vmem:[#allocation3 + $0x38] sm:$0xff]
    %v276 = vld [vmem:[#allocation3 + $0x40] sm:$0xff]
    %v277 = vld [vmem:[#allocation3 + $0x48] sm:$0xff]
    %v278 = vld [vmem:[#allocation3 + $0x50] sm:$0xff]
    %v279 = vld [vmem:[#allocation3 + $0x58] sm:$0xff]
    %v280 = vld [vmem:[#allocation3 + $0x60] sm:$0xff]
    %v281 = vld [vmem:[#allocation3 + $0x68] sm:$0xff]
    %v282 = vld [vmem:[#allocation3 + $0x70] sm:$0xff]
    %v283 = vld [vmem:[#allocation3 + $0x78] sm:$0xff]
    %v284 = vld [vmem:[#allocation3 + $0x80] sm:$0xff]
    %v285 = vld [vmem:[#allocation3 + $0x88] sm:$0xff]
    %v286 = vld [vmem:[#allocation3 + $0x90] sm:$0xff]
    %v287 = vld [vmem:[#allocation3 + $0x98] sm:$0xff]
    %v288 = vld [vmem:[#allocation3 + $0xa0] sm:$0xff]
    %v289 = vld [vmem:[#allocation3 + $0xa8] sm:$0xff]
    %v290 = vld [vmem:[#allocation3 + $0xb0] sm:$0xff]
    %v291 = vld [vmem:[#allocation3 + $0xb8] sm:$0xff]
    %v292 = vld [vmem:[#allocation3 + $0xc0] sm:$0xff]
    %v293 = vld [vmem:[#allocation3 + $0xc8] sm:$0xff]
    %v294 = vld [vmem:[#allocation3 + $0xd0] sm:$0xff]
    %v295 = vld [vmem:[#allocation3 + $0xd8] sm:$0xff]
    %v296 = vld [vmem:[#allocation3 + $0xe0] sm:$0xff]
    %v297 = vld [vmem:[#allocation3 + $0xe8] sm:$0xff]
    %v298 = vld [vmem:[#allocation3 + $0xf0] sm:$0xff]
    %v299 = vld [vmem:[#allocation3 + $0xf8] sm:$0xff]
    %v300 = vld [vmem:[#allocation3 + $0x100] sm:$0xff]
    %v301 = vld [vmem:[#allocation3 + $0x108] sm:$0xff]
    %v302 = vld [vmem:[#allocation3 + $0x110] sm:$0xff]
    %v303 = vld [vmem:[#allocation3 + $0x118] sm:$0xff]
    %v304 = vld [vmem:[#allocation3 + $0x120] sm:$0xff]
    %v305 = vld [vmem:[#allocation3 + $0x128] sm:$0xff]
    %v306 = vld [vmem:[#allocation3 + $0x130] sm:$0xff]
    %v307 = vld [vmem:[#allocation3 + $0x138] sm:$0xff]
    %v308 = vld [vmem:[#allocation3 + $0x140] sm:$0xff]
    %v309 = vld [vmem:[#allocation3 + $0x148] sm:$0xff]
    %v310 = vld [vmem:[#allocation3 + $0x150] sm:$0xff]
    %v311 = vld [vmem:[#allocation3 + $0x158] sm:$0xff]
    %v312 = vld [vmem:[#allocation3 + $0x160] sm:$0xff]
    %v313 = vld [vmem:[#allocation3 + $0x168] sm:$0xff]
    %v314 = vld [vmem:[#allocation3 + $0x170] sm:$0xff]
    %v315 = vld [vmem:[#allocation3 + $0x178] sm:$0xff]
    %v316 = vld [vmem:[#allocation3 + $0x180] sm:$0xff]
    %v317 = vld [vmem:[#allocation3 + $0x188] sm:$0xff]
    %v318 = vld [vmem:[#allocation3 + $0x190] sm:$0xff]
    %v319 = vld [vmem:[#allocation3 + $0x198] sm:$0xff]
    %v320 = vld [vmem:[#allocation3 + $0x1a0] sm:$0xff]
    %v321 = vld [vmem:[#allocation3 + $0x1a8] sm:$0xff]
    %v322 = vld [vmem:[#allocation3 + $0x1b0] sm:$0xff]
    %v323 = vld [vmem:[#allocation3 + $0x1b8] sm:$0xff]
    %v324 = vld [vmem:[#allocation3 + $0x1c0] sm:$0xff]
    %v325 = vld [vmem:[#allocation3 + $0x1c8] sm:$0xff]
    %v326 = vld [vmem:[#allocation3 + $0x1d0] sm:$0xff]
    %v327 = vld [vmem:[#allocation3 + $0x1d8] sm:$0xff]
    %v328 = vld [vmem:[#allocation3 + $0x1e0] sm:$0xff]
    %v329 = vld [vmem:[#allocation3 + $0x1e8] sm:$0xff]
    %v330 = vld [vmem:[#allocation3 + $0x1f0] sm:$0xff]
    %v331 = vld [vmem:[#allocation3 + $0x1f8] sm:$0xff]
    %332 = vmatprep.subr.mxu0 %v329
    %333 = vmatpush1.msra.mxu0 %v328
    %334 = vmatprep.subr.mxu0 %v325
    %335 = vmatpush1.msra.mxu0 %v324
    %336 = vmatprep.subr.mxu0 %v321
    %337 = vmatpush1.msra.mxu0 %v320
    %338 = vmatprep.subr.mxu0 %v317
    %339 = vmatpush1.msra.mxu0 %v316
    %340 = vmatprep.subr.mxu0 %v313
    %341 = vmatpush1.msra.mxu0 %v312
    %342 = vmatprep.subr.mxu0 %v309
    %343 = vmatpush1.msra.mxu0 %v308
    %344 = vmatprep.subr.mxu0 %v305
    %345 = vmatpush1.msra.mxu0 %v304
    %346 = vmatprep.subr.mxu0 %v301
    %347 = vmatpush1.msra.mxu0 %v300
    %348 = vmatprep.subr.mxu0 %v297
    %349 = vmatpush1.msra.mxu0 %v296
    %350 = vmatprep.subr.mxu0 %v293
    %351 = vmatpush1.msra.mxu0 %v292
    %352 = vmatprep.subr.mxu0 %v289
    %353 = vmatpush1.msra.mxu0 %v288
    %354 = vmatprep.subr.mxu0 %v285
    %355 = vmatpush1.msra.mxu0 %v284
    %356 = vmatprep.subr.mxu0 %v281
    %357 = vmatpush1.msra.mxu0 %v280
    %358 = vmatprep.subr.mxu0 %v277
    %359 = vmatpush1.msra.mxu0 %v276
    %360 = vmatprep.subr.mxu0 %v273
    %361 = vmatpush1.msra.mxu0 %v272
    %362 = vmatprep.subr.mxu0 %v269
    %363 = vmatpush1.msra.mxu0 %v268
    %364 = vmatprep.subr.mxu0 0.0
    %365 = vmatpush2.msra.mxu0 0.0
    %366 = vmatprep.subr.mxu0 0.0
    %367 = vmatpush2.msra.mxu0 0.0
    %368 = vmatprep.subr.mxu0 0.0
    %369 = vmatpush2.msra.mxu0 0.0
    %370 = vmatprep.subr.mxu0 0.0
    %371 = vmatpush2.msra.mxu0 0.0
    %372 = vmatprep.subr.mxu0 0.0
    %373 = vmatpush2.msra.mxu0 0.0
    %374 = vmatprep.subr.mxu0 0.0
    %375 = vmatpush2.msra.mxu0 0.0
    %376 = vmatprep.subr.mxu0 0.0
    %377 = vmatpush2.msra.mxu0 0.0
    %378 = vmatprep.subr.mxu0 0.0
    %379 = vmatpush2.msra.mxu0 0.0
    %380 = vmatprep.subr.mxu0 0.0
    %381 = vmatpush2.msra.mxu0 0.0
    %382 = vmatprep.subr.mxu0 0.0
    %383 = vmatpush2.msra.mxu0 0.0
    %384 = vmatprep.subr.mxu0 0.0
    %385 = vmatpush2.msra.mxu0 0.0
    %386 = vmatprep.subr.mxu0 0.0
    %387 = vmatpush2.msra.mxu0 0.0
    %388 = vmatprep.subr.mxu0 0.0
    %389 = vmatpush2.msra.mxu0 0.0
    %390 = vmatprep.subr.mxu0 0.0
    %391 = vmatpush2.msra.mxu0 0.0
    %392 = vmatprep.subr.mxu0 0.0
    %393 = vmatpush2.msra.mxu0 0.0
    %394 = vmatprep.subr.mxu0 0.0
    %395 = vmatpush2.msra.mxu0 0.0
    %396 = vmatprep.mubr.f32.mxu0 0.0
    %397 = vmatmul.mubr.f32.gmra.mxu0 0.0
    %v398 = vpop.f32.mrf.mxu0
    %v399 = vadd.f32 0.0, %v398
    %v400 = vpop.f32.mrf.mxu0
    %v401 = vadd.f32 0.0, %v400
    %402 = vdwg.mxu0
    %403 = vmatprep.subr.mxu0 %v331
    %404 = vmatpush1.msra.mxu0 %v330
    %405 = vmatprep.subr.mxu0 %v327
    %406 = vmatpush1.msra.mxu0 %v326
    %407 = vmatprep.subr.mxu0 %v323
    %408 = vmatpush1.msra.mxu0 %v322
    %409 = vmatprep.subr.mxu0 %v319
    %410 = vmatpush1.msra.mxu0 %v318
    %411 = vmatprep.subr.mxu0 %v315
    %412 = vmatpush1.msra.mxu0 %v314
    %413 = vmatprep.subr.mxu0 %v311
    %414 = vmatpush1.msra.mxu0 %v310
    %415 = vmatprep.subr.mxu0 %v307
    %416 = vmatpush1.msra.mxu0 %v306
    %417 = vmatprep.subr.mxu0 %v303
    %418 = vmatpush1.msra.mxu0 %v302
    %419 = vmatprep.subr.mxu0 %v299
    %420 = vmatpush1.msra.mxu0 %v298
    %421 = vmatprep.subr.mxu0 %v295
    %422 = vmatpush1.msra.mxu0 %v294
    %423 = vmatprep.subr.mxu0 %v291
    %424 = vmatpush1.msra.mxu0 %v290
    %425 = vmatprep.subr.mxu0 %v287
    %426 = vmatpush1.msra.mxu0 %v286
    %427 = vmatprep.subr.mxu0 %v283
    %428 = vmatpush1.msra.mxu0 %v282
    %429 = vmatprep.subr.mxu0 %v279
    %430 = vmatpush1.msra.mxu0 %v278
    %431 = vmatprep.subr.mxu0 %v275
    %432 = vmatpush1.msra.mxu0 %v274
    %433 = vmatprep.subr.mxu0 %v271
    %434 = vmatpush1.msra.mxu0 %v270
    %435 = vmatprep.subr.mxu0 0.0
    %436 = vmatpush2.msra.mxu0 0.0
    %437 = vmatprep.subr.mxu0 0.0
    %438 = vmatpush2.msra.mxu0 0.0
    %439 = vmatprep.subr.mxu0 0.0
    %440 = vmatpush2.msra.mxu0 0.0
    %441 = vmatprep.subr.mxu0 0.0
    %442 = vmatpush2.msra.mxu0 0.0
    %443 = vmatprep.subr.mxu0 0.0
    %444 = vmatpush2.msra.mxu0 0.0
    %445 = vmatprep.subr.mxu0 0.0
    %446 = vmatpush2.msra.mxu0 0.0
    %447 = vmatprep.subr.mxu0 0.0
    %448 = vmatpush2.msra.mxu0 0.0
    %449 = vmatprep.subr.mxu0 0.0
    %450 = vmatpush2.msra.mxu0 0.0
    %451 = vmatprep.subr.mxu0 0.0
    %452 = vmatpush2.msra.mxu0 0.0
    %453 = vmatprep.subr.mxu0 0.0
    %454 = vmatpush2.msra.mxu0 0.0
    %455 = vmatprep.subr.mxu0 0.0
    %456 = vmatpush2.msra.mxu0 0.0
    %457 = vmatprep.subr.mxu0 0.0
    %458 = vmatpush2.msra.mxu0 0.0
    %459 = vmatprep.subr.mxu0 0.0
    %460 = vmatpush2.msra.mxu0 0.0
    %461 = vmatprep.subr.mxu0 0.0
    %462 = vmatpush2.msra.mxu0 0.0
    %463 = vmatprep.subr.mxu0 0.0
    %464 = vmatpush2.msra.mxu0 0.0
    %465 = vmatprep.subr.mxu0 0.0
    %466 = vmatpush2.msra.mxu0 0.0
    %467 = vmatprep.mubr.f32.mxu0 0.0
    %468 = vmatmul.mubr.f32.gmra.mxu0 0.0
    %v469 = vpop.f32.mrf.mxu0
    %v470 = vadd.f32 0.0, %v469
    %v471 = vpop.f32.mrf.mxu0
    %v472 = vadd.f32 0.0, %v471
    %473 = vdwg.mxu0
    %v474 = vadd.f32 %v181, %v399
    %v475 = vadd.f32 %v183, %v401
    %v476 = vadd.f32 %v258, %v470
    %v477 = vadd.f32 %v260, %v472
    %v478 = vxor.u32 %v474, 2147483648
    %v479 = vmul.f32 %v478, 1.442695
    %v480 = vpow.pop %v479
    %v481 = vadd.f32 %v480, 1.0
    %v482 = vrcp.pop %v481
    %v483 = vmul.f32 1.0, %v482
    %v484 = vxor.u32 %v475, 2147483648
    %v485 = vmul.f32 %v484, 1.442695
    %v486 = vpow.pop %v485
    %v487 = vadd.f32 %v486, 1.0
    %v488 = vrcp.pop %v487
    %v489 = vmul.f32 1.0, %v488
    %v490 = vxor.u32 %v476, 2147483648
    %v491 = vmul.f32 %v490, 1.442695
    %v492 = vpow.pop %v491
    %v493 = vadd.f32 %v492, 1.0
    %v494 = vrcp.pop %v493
    %v495 = vmul.f32 1.0, %v494
    %v496 = vtanh.pop %v477
    %v497 = vmul.f32 %v489, %v496
    %v498 = vmul.f32 %v483, 0.0
    %v499 = vadd.f32 %v497, %v498
    %v500 = vtanh.pop %v499
    %v501 = vmul.f32 %v495, %v500
    %502 = vst [vmem:[#allocation2] sm:$0x3] %v501
    %v503 = vld [vmem:[#allocation3] sm:$0xff]
    %v504 = vld [vmem:[#allocation3 + $0x8] sm:$0xff]
    %v505 = vld [vmem:[#allocation3 + $0x10] sm:$0xff]
    %v506 = vld [vmem:[#allocation3 + $0x18] sm:$0xff]
    %v507 = vld [vmem:[#allocation3 + $0x20] sm:$0xff]
    %v508 = vld [vmem:[#allocation3 + $0x28] sm:$0xff]
    %v509 = vld [vmem:[#allocation3 + $0x30] sm:$0xff]
    %v510 = vld [vmem:[#allocation3 + $0x38] sm:$0xff]
    %v511 = vld [vmem:[#allocation3 + $0x40] sm:$0xff]
    %v512 = vld [vmem:[#allocation3 + $0x48] sm:$0xff]
    %v513 = vld [vmem:[#allocation3 + $0x50] sm:$0xff]
    %v514 = vld [vmem:[#allocation3 + $0x58] sm:$0xff]
    %v515 = vld [vmem:[#allocation3 + $0x60] sm:$0xff]
    %v516 = vld [vmem:[#allocation3 + $0x68] sm:$0xff]
    %v517 = vld [vmem:[#allocation3 + $0x70] sm:$0xff]
    %v518 = vld [vmem:[#allocation3 + $0x78] sm:$0xff]
    %v519 = vld [vmem:[#allocation3 + $0x80] sm:$0xff]
    %v520 = vld [vmem:[#allocation3 + $0x88] sm:$0xff]
    %v521 = vld [vmem:[#allocation3 + $0x90] sm:$0xff]
    %v522 = vld [vmem:[#allocation3 + $0x98] sm:$0xff]
    %v523 = vld [vmem:[#allocation3 + $0xa0] sm:$0xff]
    %v524 = vld [vmem:[#allocation3 + $0xa8] sm:$0xff]
    %v525 = vld [vmem:[#allocation3 + $0xb0] sm:$0xff]
    %v526 = vld [vmem:[#allocation3 + $0xb8] sm:$0xff]
    %v527 = vld [vmem:[#allocation3 + $0xc0] sm:$0xff]
    %v528 = vld [vmem:[#allocation3 + $0xc8] sm:$0xff]
    %v529 = vld [vmem:[#allocation3 + $0xd0] sm:$0xff]
    %v530 = vld [vmem:[#allocation3 + $0xd8] sm:$0xff]
    %v531 = vld [vmem:[#allocation3 + $0xe0] sm:$0xff]
    %v532 = vld [vmem:[#allocation3 + $0xe8] sm:$0xff]
    %v533 = vld [vmem:[#allocation3 + $0xf0] sm:$0xff]
    %v534 = vld [vmem:[#allocation3 + $0xf8] sm:$0xff]
    %v535 = vld [vmem:[#allocation3 + $0x100] sm:$0xff]
    %v536 = vld [vmem:[#allocation3 + $0x108] sm:$0xff]
    %v537 = vld [vmem:[#allocation3 + $0x110] sm:$0xff]
    %v538 = vld [vmem:[#allocation3 + $0x118] sm:$0xff]
    %v539 = vld [vmem:[#allocation3 + $0x120] sm:$0xff]
    %v540 = vld [vmem:[#allocation3 + $0x128] sm:$0xff]
    %v541 = vld [vmem:[#allocation3 + $0x130] sm:$0xff]
    %v542 = vld [vmem:[#allocation3 + $0x138] sm:$0xff]
    %v543 = vld [vmem:[#allocation3 + $0x140] sm:$0xff]
    %v544 = vld [vmem:[#allocation3 + $0x148] sm:$0xff]
    %v545 = vld [vmem:[#allocation3 + $0x150] sm:$0xff]
    %v546 = vld [vmem:[#allocation3 + $0x158] sm:$0xff]
    %v547 = vld [vmem:[#allocation3 + $0x160] sm:$0xff]
    %v548 = vld [vmem:[#allocation3 + $0x168] sm:$0xff]
    %v549 = vld [vmem:[#allocation3 + $0x170] sm:$0xff]
    %v550 = vld [vmem:[#allocation3 + $0x178] sm:$0xff]
    %v551 = vld [vmem:[#allocation3 + $0x180] sm:$0xff]
    %v552 = vld [vmem:[#allocation3 + $0x188] sm:$0xff]
    %v553 = vld [vmem:[#allocation3 + $0x190] sm:$0xff]
    %v554 = vld [vmem:[#allocation3 + $0x198] sm:$0xff]
    %v555 = vld [vmem:[#allocation3 + $0x1a0] sm:$0xff]
    %v556 = vld [vmem:[#allocation3 + $0x1a8] sm:$0xff]
    %v557 = vld [vmem:[#allocation3 + $0x1b0] sm:$0xff]
    %v558 = vld [vmem:[#allocation3 + $0x1b8] sm:$0xff]
    %v559 = vld [vmem:[#allocation3 + $0x1c0] sm:$0xff]
    %v560 = vld [vmem:[#allocation3 + $0x1c8] sm:$0xff]
    %v561 = vld [vmem:[#allocation3 + $0x1d0] sm:$0xff]
    %v562 = vld [vmem:[#allocation3 + $0x1d8] sm:$0xff]
    %v563 = vld [vmem:[#allocation3 + $0x1e0] sm:$0xff]
    %v564 = vld [vmem:[#allocation3 + $0x1e8] sm:$0xff]
    %v565 = vld [vmem:[#allocation3 + $0x1f0] sm:$0xff]
    %v566 = vld [vmem:[#allocation3 + $0x1f8] sm:$0xff]
    %567 = vmatprep.subr.mxu0 %v564
    %568 = vmatpush1.msra.mxu0 %v563
    %569 = vmatprep.subr.mxu0 %v560
    %570 = vmatpush1.msra.mxu0 %v559
    %571 = vmatprep.subr.mxu0 %v556
    %572 = vmatpush1.msra.mxu0 %v555
    %573 = vmatprep.subr.mxu0 %v552
    %574 = vmatpush1.msra.mxu0 %v551
    %575 = vmatprep.subr.mxu0 %v548
    %576 = vmatpush1.msra.mxu0 %v547
    %577 = vmatprep.subr.mxu0 %v544
    %578 = vmatpush1.msra.mxu0 %v543
    %579 = vmatprep.subr.mxu0 %v540
    %580 = vmatpush1.msra.mxu0 %v539
    %581 = vmatprep.subr.mxu0 %v536
    %582 = vmatpush1.msra.mxu0 %v535
    %583 = vmatprep.subr.mxu0 %v532
    %584 = vmatpush1.msra.mxu0 %v531
    %585 = vmatprep.subr.mxu0 %v528
    %586 = vmatpush1.msra.mxu0 %v527
    %587 = vmatprep.subr.mxu0 %v524
    %588 = vmatpush1.msra.mxu0 %v523
    %589 = vmatprep.subr.mxu0 %v520
    %590 = vmatpush1.msra.mxu0 %v519
    %591 = vmatprep.subr.mxu0 %v516
    %592 = vmatpush1.msra.mxu0 %v515
    %593 = vmatprep.subr.mxu0 %v512
    %594 = vmatpush1.msra.mxu0 %v511
    %595 = vmatprep.subr.mxu0 %v508
    %596 = vmatpush1.msra.mxu0 %v507
    %597 = vmatprep.subr.mxu0 %v504
    %598 = vmatpush1.msra.mxu0 %v503
    %599 = vmatprep.subr.mxu0 0.0
    %600 = vmatpush2.msra.mxu0 0.0
    %601 = vmatprep.subr.mxu0 0.0
    %602 = vmatpush2.msra.mxu0 0.0
    %603 = vmatprep.subr.mxu0 0.0
    %604 = vmatpush2.msra.mxu0 0.0
    %605 = vmatprep.subr.mxu0 0.0
    %606 = vmatpush2.msra.mxu0 0.0
    %607 = vmatprep.subr.mxu0 0.0
    %608 = vmatpush2.msra.mxu0 0.0
    %609 = vmatprep.subr.mxu0 0.0
    %610 = vmatpush2.msra.mxu0 0.0
    %611 = vmatprep.subr.mxu0 0.0
    %612 = vmatpush2.msra.mxu0 0.0
    %613 = vmatprep.subr.mxu0 0.0
    %614 = vmatpush2.msra.mxu0 0.0
    %615 = vmatprep.subr.mxu0 0.0
    %616 = vmatpush2.msra.mxu0 0.0
    %617 = vmatprep.subr.mxu0 0.0
    %618 = vmatpush2.msra.mxu0 0.0
    %619 = vmatprep.subr.mxu0 0.0
    %620 = vmatpush2.msra.mxu0 0.0
    %621 = vmatprep.subr.mxu0 0.0
    %622 = vmatpush2.msra.mxu0 0.0
    %623 = vmatprep.subr.mxu0 0.0
    %624 = vmatpush2.msra.mxu0 0.0
    %625 = vmatprep.subr.mxu0 0.0
    %626 = vmatpush2.msra.mxu0 0.0
    %627 = vmatprep.subr.mxu0 0.0
    %628 = vmatpush2.msra.mxu0 0.0
    %629 = vmatprep.subr.mxu0 0.0
    %630 = vmatpush2.msra.mxu0 0.0
    %631 = vmatprep.mubr.f32.mxu0 0.0
    %632 = vmatmul.mubr.f32.gmra.mxu0 %v501
    %v633 = vpop.f32.mrf.mxu0
    %v634 = vadd.f32 0.0, %v633
    %v635 = vpop.f32.mrf.mxu0
    %v636 = vadd.f32 0.0, %v635
    %637 = vdwg.mxu0
    %638 = vmatprep.subr.mxu0 %v566
    %639 = vmatpush1.msra.mxu0 %v565
    %640 = vmatprep.subr.mxu0 %v562
    %641 = vmatpush1.msra.mxu0 %v561
    %642 = vmatprep.subr.mxu0 %v558
    %643 = vmatpush1.msra.mxu0 %v557
    %644 = vmatprep.subr.mxu0 %v554
    %645 = vmatpush1.msra.mxu0 %v553
    %646 = vmatprep.subr.mxu0 %v550
    %647 = vmatpush1.msra.mxu0 %v549
    %648 = vmatprep.subr.mxu0 %v546
    %649 = vmatpush1.msra.mxu0 %v545
    %650 = vmatprep.subr.mxu0 %v542
    %651 = vmatpush1.msra.mxu0 %v541
    %652 = vmatprep.subr.mxu0 %v538
    %653 = vmatpush1.msra.mxu0 %v537
    %654 = vmatprep.subr.mxu0 %v534
    %655 = vmatpush1.msra.mxu0 %v533
    %656 = vmatprep.subr.mxu0 %v530
    %657 = vmatpush1.msra.mxu0 %v529
    %658 = vmatprep.subr.mxu0 %v526
    %659 = vmatpush1.msra.mxu0 %v525
    %660 = vmatprep.subr.mxu0 %v522
    %661 = vmatpush1.msra.mxu0 %v521
    %662 = vmatprep.subr.mxu0 %v518
    %663 = vmatpush1.msra.mxu0 %v517
    %664 = vmatprep.subr.mxu0 %v514
    %665 = vmatpush1.msra.mxu0 %v513
    %666 = vmatprep.subr.mxu0 %v510
    %667 = vmatpush1.msra.mxu0 %v509
    %668 = vmatprep.subr.mxu0 %v506
    %669 = vmatpush1.msra.mxu0 %v505
    %670 = vmatprep.subr.mxu0 0.0
    %671 = vmatpush2.msra.mxu0 0.0
    %672 = vmatprep.subr.mxu0 0.0
    %673 = vmatpush2.msra.mxu0 0.0
    %674 = vmatprep.subr.mxu0 0.0
    %675 = vmatpush2.msra.mxu0 0.0
    %676 = vmatprep.subr.mxu0 0.0
    %677 = vmatpush2.msra.mxu0 0.0
    %678 = vmatprep.subr.mxu0 0.0
    %679 = vmatpush2.msra.mxu0 0.0
    %680 = vmatprep.subr.mxu0 0.0
    %681 = vmatpush2.msra.mxu0 0.0
    %682 = vmatprep.subr.mxu0 0.0
    %683 = vmatpush2.msra.mxu0 0.0
    %684 = vmatprep.subr.mxu0 0.0
    %685 = vmatpush2.msra.mxu0 0.0
    %686 = vmatprep.subr.mxu0 0.0
    %687 = vmatpush2.msra.mxu0 0.0
    %688 = vmatprep.subr.mxu0 0.0
    %689 = vmatpush2.msra.mxu0 0.0
    %690 = vmatprep.subr.mxu0 0.0
    %691 = vmatpush2.msra.mxu0 0.0
    %692 = vmatprep.subr.mxu0 0.0
    %693 = vmatpush2.msra.mxu0 0.0
    %694 = vmatprep.subr.mxu0 0.0
    %695 = vmatpush2.msra.mxu0 0.0
    %696 = vmatprep.subr.mxu0 0.0
    %697 = vmatpush2.msra.mxu0 0.0
    %698 = vmatprep.subr.mxu0 0.0
    %699 = vmatpush2.msra.mxu0 0.0
    %700 = vmatprep.subr.mxu0 0.0
    %701 = vmatpush2.msra.mxu0 0.0
    %702 = vmatprep.mubr.f32.mxu0 0.0
    %703 = vmatmul.mubr.f32.gmra.mxu0 %v501
    %v704 = vpop.f32.mrf.mxu0
    %v705 = vadd.f32 0.0, %v704
    %v706 = vpop.f32.mrf.mxu0
    %v707 = vadd.f32 0.0, %v706
    %708 = vdwg.mxu0
    %v713 = vrot.slane %v634, 6
    %v714 = vrot.slane %v636, 6
    %v715 = vrot.slane %v705, 6
    %v716 = vrot.slane %v707, 6
    %v721 = vadd.f32 %v181, %v713
    %v722 = vadd.f32 %v183, %v714
    %v723 = vadd.f32 %v258, %v715
    %v724 = vadd.f32 %v260, %v716
    %v725 = vxor.u32 %v721, 2147483648
    %v726 = vmul.f32 %v725, 1.442695
    %v727 = vpow.pop %v726
    %v728 = vadd.f32 %v727, 1.0
    %v729 = vrcp.pop %v728
    %v730 = vmul.f32 1.0, %v729
    %v731 = vxor.u32 %v722, 2147483648
    %v732 = vmul.f32 %v731, 1.442695
    %v733 = vpow.pop %v732
    %v734 = vadd.f32 %v733, 1.0
    %v735 = vrcp.pop %v734
    %v736 = vmul.f32 1.0, %v735
    %v737 = vxor.u32 %v723, 2147483648
    %v738 = vmul.f32 %v737, 1.442695
    %v739 = vpow.pop %v738
    %v740 = vadd.f32 %v739, 1.0
    %v741 = vrcp.pop %v740
    %v742 = vmul.f32 1.0, %v741
    %v743 = vtanh.pop %v724
    %v744 = vmul.f32 %v736, %v743
    %v746 = vrot.slane %v499, 6
    %v748 = vmul.f32 %v730, %v746
    %v749 = vadd.f32 %v744, %v748
    %v750 = vtanh.pop %v749
    %v751 = vmul.f32 %v742, %v750
    %752 = vst [vmem:[#allocation2] sm:$0xc] %v751
    %v753 = vld [vmem:[#allocation3] sm:$0xff]
    %v754 = vld [vmem:[#allocation3 + $0x8] sm:$0xff]
    %v755 = vld [vmem:[#allocation3 + $0x10] sm:$0xff]
    %v756 = vld [vmem:[#allocation3 + $0x18] sm:$0xff]
    %v757 = vld [vmem:[#allocation3 + $0x20] sm:$0xff]
    %v758 = vld [vmem:[#allocation3 + $0x28] sm:$0xff]
    %v759 = vld [vmem:[#allocation3 + $0x30] sm:$0xff]
    %v760 = vld [vmem:[#allocation3 + $0x38] sm:$0xff]
    %v761 = vld [vmem:[#allocation3 + $0x40] sm:$0xff]
    %v762 = vld [vmem:[#allocation3 + $0x48] sm:$0xff]
    %v763 = vld [vmem:[#allocation3 + $0x50] sm:$0xff]
    %v764 = vld [vmem:[#allocation3 + $0x58] sm:$0xff]
    %v765 = vld [vmem:[#allocation3 + $0x60] sm:$0xff]
    %v766 = vld [vmem:[#allocation3 + $0x68] sm:$0xff]
    %v767 = vld [vmem:[#allocation3 + $0x70] sm:$0xff]
    %v768 = vld [vmem:[#allocation3 + $0x78] sm:$0xff]
    %v769 = vld [vmem:[#allocation3 + $0x80] sm:$0xff]
    %v770 = vld [vmem:[#allocation3 + $0x88] sm:$0xff]
    %v771 = vld [vmem:[#allocation3 + $0x90] sm:$0xff]
    %v772 = vld [vmem:[#allocation3 + $0x98] sm:$0xff]
    %v773 = vld [vmem:[#allocation3 + $0xa0] sm:$0xff]
    %v774 = vld [vmem:[#allocation3 + $0xa8] sm:$0xff]
    %v775 = vld [vmem:[#allocation3 + $0xb0] sm:$0xff]
    %v776 = vld [vmem:[#allocation3 + $0xb8] sm:$0xff]
    %v777 = vld [vmem:[#allocation3 + $0xc0] sm:$0xff]
    %v778 = vld [vmem:[#allocation3 + $0xc8] sm:$0xff]
    %v779 = vld [vmem:[#allocation3 + $0xd0] sm:$0xff]
    %v780 = vld [vmem:[#allocation3 + $0xd8] sm:$0xff]
    %v781 = vld [vmem:[#allocation3 + $0xe0] sm:$0xff]
    %v782 = vld [vmem:[#allocation3 + $0xe8] sm:$0xff]
    %v783 = vld [vmem:[#allocation3 + $0xf0] sm:$0xff]
    %v784 = vld [vmem:[#allocation3 + $0xf8] sm:$0xff]
    %v785 = vld [vmem:[#allocation3 + $0x100] sm:$0xff]
    %v786 = vld [vmem:[#allocation3 + $0x108] sm:$0xff]
    %v787 = vld [vmem:[#allocation3 + $0x110] sm:$0xff]
    %v788 = vld [vmem:[#allocation3 + $0x118] sm:$0xff]
    %v789 = vld [vmem:[#allocation3 + $0x120] sm:$0xff]
    %v790 = vld [vmem:[#allocation3 + $0x128] sm:$0xff]
    %v791 = vld [vmem:[#allocation3 + $0x130] sm:$0xff]
    %v792 = vld [vmem:[#allocation3 + $0x138] sm:$0xff]
    %v793 = vld [vmem:[#allocation3 + $0x140] sm:$0xff]
    %v794 = vld [vmem:[#allocation3 + $0x148] sm:$0xff]
    %v795 = vld [vmem:[#allocation3 + $0x150] sm:$0xff]
    %v796 = vld [vmem:[#allocation3 + $0x158] sm:$0xff]
    %v797 = vld [vmem:[#allocation3 + $0x160] sm:$0xff]
    %v798 = vld [vmem:[#allocation3 + $0x168] sm:$0xff]
    %v799 = vld [vmem:[#allocation3 + $0x170] sm:$0xff]
    %v800 = vld [vmem:[#allocation3 + $0x178] sm:$0xff]
    %v801 = vld [vmem:[#allocation3 + $0x180] sm:$0xff]
    %v802 = vld [vmem:[#allocation3 + $0x188] sm:$0xff]
    %v803 = vld [vmem:[#allocation3 + $0x190] sm:$0xff]
    %v804 = vld [vmem:[#allocation3 + $0x198] sm:$0xff]
    %v805 = vld [vmem:[#allocation3 + $0x1a0] sm:$0xff]
    %v806 = vld [vmem:[#allocation3 + $0x1a8] sm:$0xff]
    %v807 = vld [vmem:[#allocation3 + $0x1b0] sm:$0xff]
    %v808 = vld [vmem:[#allocation3 + $0x1b8] sm:$0xff]
    %v809 = vld [vmem:[#allocation3 + $0x1c0] sm:$0xff]
    %v810 = vld [vmem:[#allocation3 + $0x1c8] sm:$0xff]
    %v811 = vld [vmem:[#allocation3 + $0x1d0] sm:$0xff]
    %v812 = vld [vmem:[#allocation3 + $0x1d8] sm:$0xff]
    %v813 = vld [vmem:[#allocation3 + $0x1e0] sm:$0xff]
    %v814 = vld [vmem:[#allocation3 + $0x1e8] sm:$0xff]
    %v815 = vld [vmem:[#allocation3 + $0x1f0] sm:$0xff]
    %v816 = vld [vmem:[#allocation3 + $0x1f8] sm:$0xff]
    %v818 = vrot.slane %v751, 2
    %820 = vmatprep.subr.mxu0 %v814
    %821 = vmatpush1.msra.mxu0 %v813
    %822 = vmatprep.subr.mxu0 %v810
    %823 = vmatpush1.msra.mxu0 %v809
    %824 = vmatprep.subr.mxu0 %v806
    %825 = vmatpush1.msra.mxu0 %v805
    %826 = vmatprep.subr.mxu0 %v802
    %827 = vmatpush1.msra.mxu0 %v801
    %828 = vmatprep.subr.mxu0 %v798
    %829 = vmatpush1.msra.mxu0 %v797
    %830 = vmatprep.subr.mxu0 %v794
    %831 = vmatpush1.msra.mxu0 %v793
    %832 = vmatprep.subr.mxu0 %v790
    %833 = vmatpush1.msra.mxu0 %v789
    %834 = vmatprep.subr.mxu0 %v786
    %835 = vmatpush1.msra.mxu0 %v785
    %836 = vmatprep.subr.mxu0 %v782
    %837 = vmatpush1.msra.mxu0 %v781
    %838 = vmatprep.subr.mxu0 %v778
    %839 = vmatpush1.msra.mxu0 %v777
    %840 = vmatprep.subr.mxu0 %v774
    %841 = vmatpush1.msra.mxu0 %v773
    %842 = vmatprep.subr.mxu0 %v770
    %843 = vmatpush1.msra.mxu0 %v769
    %844 = vmatprep.subr.mxu0 %v766
    %845 = vmatpush1.msra.mxu0 %v765
    %846 = vmatprep.subr.mxu0 %v762
    %847 = vmatpush1.msra.mxu0 %v761
    %848 = vmatprep.subr.mxu0 %v758
    %849 = vmatpush1.msra.mxu0 %v757
    %850 = vmatprep.subr.mxu0 %v754
    %851 = vmatpush1.msra.mxu0 %v753
    %852 = vmatprep.subr.mxu0 0.0
    %853 = vmatpush2.msra.mxu0 0.0
    %854 = vmatprep.subr.mxu0 0.0
    %855 = vmatpush2.msra.mxu0 0.0
    %856 = vmatprep.subr.mxu0 0.0
    %857 = vmatpush2.msra.mxu0 0.0
    %858 = vmatprep.subr.mxu0 0.0
    %859 = vmatpush2.msra.mxu0 0.0
    %860 = vmatprep.subr.mxu0 0.0
    %861 = vmatpush2.msra.mxu0 0.0
    %862 = vmatprep.subr.mxu0 0.0
    %863 = vmatpush2.msra.mxu0 0.0
    %864 = vmatprep.subr.mxu0 0.0
    %865 = vmatpush2.msra.mxu0 0.0
    %866 = vmatprep.subr.mxu0 0.0
    %867 = vmatpush2.msra.mxu0 0.0
    %868 = vmatprep.subr.mxu0 0.0
    %869 = vmatpush2.msra.mxu0 0.0
    %870 = vmatprep.subr.mxu0 0.0
    %871 = vmatpush2.msra.mxu0 0.0
    %872 = vmatprep.subr.mxu0 0.0
    %873 = vmatpush2.msra.mxu0 0.0
    %874 = vmatprep.subr.mxu0 0.0
    %875 = vmatpush2.msra.mxu0 0.0
    %876 = vmatprep.subr.mxu0 0.0
    %877 = vmatpush2.msra.mxu0 0.0
    %878 = vmatprep.subr.mxu0 0.0
    %879 = vmatpush2.msra.mxu0 0.0
    %880 = vmatprep.subr.mxu0 0.0
    %881 = vmatpush2.msra.mxu0 0.0
    %882 = vmatprep.subr.mxu0 0.0
    %883 = vmatpush2.msra.mxu0 0.0
    %884 = vmatprep.mubr.f32.mxu0 0.0
    %885 = vmatmul.mubr.f32.gmra.mxu0 %v818
    %v886 = vpop.f32.mrf.mxu0
    %v887 = vadd.f32 0.0, %v886
    %v888 = vpop.f32.mrf.mxu0
    %v889 = vadd.f32 0.0, %v888
    %890 = vdwg.mxu0
    %891 = vmatprep.subr.mxu0 %v816
    %892 = vmatpush1.msra.mxu0 %v815
    %893 = vmatprep.subr.mxu0 %v812
    %894 = vmatpush1.msra.mxu0 %v811
    %895 = vmatprep.subr.mxu0 %v808
    %896 = vmatpush1.msra.mxu0 %v807
    %897 = vmatprep.subr.mxu0 %v804
    %898 = vmatpush1.msra.mxu0 %v803
    %899 = vmatprep.subr.mxu0 %v800
    %900 = vmatpush1.msra.mxu0 %v799
    %901 = vmatprep.subr.mxu0 %v796
    %902 = vmatpush1.msra.mxu0 %v795
    %903 = vmatprep.subr.mxu0 %v792
    %904 = vmatpush1.msra.mxu0 %v791
    %905 = vmatprep.subr.mxu0 %v788
    %906 = vmatpush1.msra.mxu0 %v787
    %907 = vmatprep.subr.mxu0 %v784
    %908 = vmatpush1.msra.mxu0 %v783
    %909 = vmatprep.subr.mxu0 %v780
    %910 = vmatpush1.msra.mxu0 %v779
    %911 = vmatprep.subr.mxu0 %v776
    %912 = vmatpush1.msra.mxu0 %v775
    %913 = vmatprep.subr.mxu0 %v772
    %914 = vmatpush1.msra.mxu0 %v771
    %915 = vmatprep.subr.mxu0 %v768
    %916 = vmatpush1.msra.mxu0 %v767
    %917 = vmatprep.subr.mxu0 %v764
    %918 = vmatpush1.msra.mxu0 %v763
    %919 = vmatprep.subr.mxu0 %v760
    %920 = vmatpush1.msra.mxu0 %v759
    %921 = vmatprep.subr.mxu0 %v756
    %922 = vmatpush1.msra.mxu0 %v755
    %923 = vmatprep.subr.mxu0 0.0
    %924 = vmatpush2.msra.mxu0 0.0
    %925 = vmatprep.subr.mxu0 0.0
    %926 = vmatpush2.msra.mxu0 0.0
    %927 = vmatprep.subr.mxu0 0.0
    %928 = vmatpush2.msra.mxu0 0.0
    %929 = vmatprep.subr.mxu0 0.0
    %930 = vmatpush2.msra.mxu0 0.0
    %931 = vmatprep.subr.mxu0 0.0
    %932 = vmatpush2.msra.mxu0 0.0
    %933 = vmatprep.subr.mxu0 0.0
    %934 = vmatpush2.msra.mxu0 0.0
    %935 = vmatprep.subr.mxu0 0.0
    %936 = vmatpush2.msra.mxu0 0.0
    %937 = vmatprep.subr.mxu0 0.0
    %938 = vmatpush2.msra.mxu0 0.0
    %939 = vmatprep.subr.mxu0 0.0
    %940 = vmatpush2.msra.mxu0 0.0
    %941 = vmatprep.subr.mxu0 0.0
    %942 = vmatpush2.msra.mxu0 0.0
    %943 = vmatprep.subr.mxu0 0.0
    %944 = vmatpush2.msra.mxu0 0.0
    %945 = vmatprep.subr.mxu0 0.0
    %946 = vmatpush2.msra.mxu0 0.0
    %947 = vmatprep.subr.mxu0 0.0
    %948 = vmatpush2.msra.mxu0 0.0
    %949 = vmatprep.subr.mxu0 0.0
    %950 = vmatpush2.msra.mxu0 0.0
    %951 = vmatprep.subr.mxu0 0.0
    %952 = vmatpush2.msra.mxu0 0.0
    %953 = vmatprep.subr.mxu0 0.0
    %954 = vmatpush2.msra.mxu0 0.0
    %955 = vmatprep.mubr.f32.mxu0 0.0
    %956 = vmatmul.mubr.f32.gmra.mxu0 %v818
    %v957 = vpop.f32.mrf.mxu0
    %v958 = vadd.f32 0.0, %v957
    %v959 = vpop.f32.mrf.mxu0
    %v960 = vadd.f32 0.0, %v959
    %961 = vdwg.mxu0
    %v966 = vrot.slane %v887, 4
    %v967 = vrot.slane %v889, 4
    %v968 = vrot.slane %v958, 4
    %v969 = vrot.slane %v960, 4
    %v974 = vadd.f32 %v181, %v966
    %v975 = vadd.f32 %v183, %v967
    %v976 = vadd.f32 %v258, %v968
    %v977 = vadd.f32 %v260, %v969
    %v978 = vxor.u32 %v974, 2147483648
    %v979 = vmul.f32 %v978, 1.442695
    %v980 = vpow.pop %v979
    %v981 = vadd.f32 %v980, 1.0
    %v982 = vrcp.pop %v981
    %v983 = vmul.f32 1.0, %v982
    %v984 = vxor.u32 %v975, 2147483648
    %v985 = vmul.f32 %v984, 1.442695
    %v986 = vpow.pop %v985
    %v987 = vadd.f32 %v986, 1.0
    %v988 = vrcp.pop %v987
    %v989 = vmul.f32 1.0, %v988
    %v990 = vxor.u32 %v976, 2147483648
    %v991 = vmul.f32 %v990, 1.442695
    %v992 = vpow.pop %v991
    %v993 = vadd.f32 %v992, 1.0
    %v994 = vrcp.pop %v993
    %v995 = vmul.f32 1.0, %v994
    %v996 = vtanh.pop %v977
    %v997 = vmul.f32 %v989, %v996
    %v999 = vrot.slane %v749, 6
    %v1001 = vmul.f32 %v983, %v999
    %v1002 = vadd.f32 %v997, %v1001
    %v1003 = vtanh.pop %v1002
    %v1004 = vmul.f32 %v995, %v1003
    %1005 = vst [vmem:[#allocation2] sm:$0x30] %v1004
    %v1006 = vld [vmem:[#allocation3] sm:$0xff]
    %v1007 = vld [vmem:[#allocation3 + $0x8] sm:$0xff]
    %v1008 = vld [vmem:[#allocation3 + $0x10] sm:$0xff]
    %v1009 = vld [vmem:[#allocation3 + $0x18] sm:$0xff]
    %v1010 = vld [vmem:[#allocation3 + $0x20] sm:$0xff]
    %v1011 = vld [vmem:[#allocation3 + $0x28] sm:$0xff]
    %v1012 = vld [vmem:[#allocation3 + $0x30] sm:$0xff]
    %v1013 = vld [vmem:[#allocation3 + $0x38] sm:$0xff]
    %v1014 = vld [vmem:[#allocation3 + $0x40] sm:$0xff]
    %v1015 = vld [vmem:[#allocation3 + $0x48] sm:$0xff]
    %v1016 = vld [vmem:[#allocation3 + $0x50] sm:$0xff]
    %v1017 = vld [vmem:[#allocation3 + $0x58] sm:$0xff]
    %v1018 = vld [vmem:[#allocation3 + $0x60] sm:$0xff]
    %v1019 = vld [vmem:[#allocation3 + $0x68] sm:$0xff]
    %v1020 = vld [vmem:[#allocation3 + $0x70] sm:$0xff]
    %v1021 = vld [vmem:[#allocation3 + $0x78] sm:$0xff]
    %v1022 = vld [vmem:[#allocation3 + $0x80] sm:$0xff]
    %v1023 = vld [vmem:[#allocation3 + $0x88] sm:$0xff]
    %v1024 = vld [vmem:[#allocation3 + $0x90] sm:$0xff]
    %v1025 = vld [vmem:[#allocation3 + $0x98] sm:$0xff]
    %v1026 = vld [vmem:[#allocation3 + $0xa0] sm:$0xff]
    %v1027 = vld [vmem:[#allocation3 + $0xa8] sm:$0xff]
    %v1028 = vld [vmem:[#allocation3 + $0xb0] sm:$0xff]
    %v1029 = vld [vmem:[#allocation3 + $0xb8] sm:$0xff]
    %v1030 = vld [vmem:[#allocation3 + $0xc0] sm:$0xff]
    %v1031 = vld [vmem:[#allocation3 + $0xc8] sm:$0xff]
    %v1032 = vld [vmem:[#allocation3 + $0xd0] sm:$0xff]
    %v1033 = vld [vmem:[#allocation3 + $0xd8] sm:$0xff]
    %v1034 = vld [vmem:[#allocation3 + $0xe0] sm:$0xff]
    %v1035 = vld [vmem:[#allocation3 + $0xe8] sm:$0xff]
    %v1036 = vld [vmem:[#allocation3 + $0xf0] sm:$0xff]
    %v1037 = vld [vmem:[#allocation3 + $0xf8] sm:$0xff]
    %v1038 = vld [vmem:[#allocation3 + $0x100] sm:$0xff]
    %v1039 = vld [vmem:[#allocation3 + $0x108] sm:$0xff]
    %v1040 = vld [vmem:[#allocation3 + $0x110] sm:$0xff]
    %v1041 = vld [vmem:[#allocation3 + $0x118] sm:$0xff]
    %v1042 = vld [vmem:[#allocation3 + $0x120] sm:$0xff]
    %v1043 = vld [vmem:[#allocation3 + $0x128] sm:$0xff]
    %v1044 = vld [vmem:[#allocation3 + $0x130] sm:$0xff]
    %v1045 = vld [vmem:[#allocation3 + $0x138] sm:$0xff]
    %v1046 = vld [vmem:[#allocation3 + $0x140] sm:$0xff]
    %v1047 = vld [vmem:[#allocation3 + $0x148] sm:$0xff]
    %v1048 = vld [vmem:[#allocation3 + $0x150] sm:$0xff]
    %v1049 = vld [vmem:[#allocation3 + $0x158] sm:$0xff]
    %v1050 = vld [vmem:[#allocation3 + $0x160] sm:$0xff]
    %v1051 = vld [vmem:[#allocation3 + $0x168] sm:$0xff]
    %v1052 = vld [vmem:[#allocation3 + $0x170] sm:$0xff]
    %v1053 = vld [vmem:[#allocation3 + $0x178] sm:$0xff]
    %v1054 = vld [vmem:[#allocation3 + $0x180] sm:$0xff]
    %v1055 = vld [vmem:[#allocation3 + $0x188] sm:$0xff]
    %v1056 = vld [vmem:[#allocation3 + $0x190] sm:$0xff]
    %v1057 = vld [vmem:[#allocation3 + $0x198] sm:$0xff]
    %v1058 = vld [vmem:[#allocation3 + $0x1a0] sm:$0xff]
    %v1059 = vld [vmem:[#allocation3 + $0x1a8] sm:$0xff]
    %v1060 = vld [vmem:[#allocation3 + $0x1b0] sm:$0xff]
    %v1061 = vld [vmem:[#allocation3 + $0x1b8] sm:$0xff]
    %v1062 = vld [vmem:[#allocation3 + $0x1c0] sm:$0xff]
    %v1063 = vld [vmem:[#allocation3 + $0x1c8] sm:$0xff]
    %v1064 = vld [vmem:[#allocation3 + $0x1d0] sm:$0xff]
    %v1065 = vld [vmem:[#allocation3 + $0x1d8] sm:$0xff]
    %v1066 = vld [vmem:[#allocation3 + $0x1e0] sm:$0xff]
    %v1067 = vld [vmem:[#allocation3 + $0x1e8] sm:$0xff]
    %v1068 = vld [vmem:[#allocation3 + $0x1f0] sm:$0xff]
    %v1069 = vld [vmem:[#allocation3 + $0x1f8] sm:$0xff]
    %v1071 = vrot.slane %v1004, 4
    %1073 = vmatprep.subr.mxu0 %v1067
    %1074 = vmatpush1.msra.mxu0 %v1066
    %1075 = vmatprep.subr.mxu0 %v1063
    %1076 = vmatpush1.msra.mxu0 %v1062
    %1077 = vmatprep.subr.mxu0 %v1059
    %1078 = vmatpush1.msra.mxu0 %v1058
    %1079 = vmatprep.subr.mxu0 %v1055
    %1080 = vmatpush1.msra.mxu0 %v1054
    %1081 = vmatprep.subr.mxu0 %v1051
    %1082 = vmatpush1.msra.mxu0 %v1050
    %1083 = vmatprep.subr.mxu0 %v1047
    %1084 = vmatpush1.msra.mxu0 %v1046
    %1085 = vmatprep.subr.mxu0 %v1043
    %1086 = vmatpush1.msra.mxu0 %v1042
    %1087 = vmatprep.subr.mxu0 %v1039
    %1088 = vmatpush1.msra.mxu0 %v1038
    %1089 = vmatprep.subr.mxu0 %v1035
    %1090 = vmatpush1.msra.mxu0 %v1034
    %1091 = vmatprep.subr.mxu0 %v1031
    %1092 = vmatpush1.msra.mxu0 %v1030
    %1093 = vmatprep.subr.mxu0 %v1027
    %1094 = vmatpush1.msra.mxu0 %v1026
    %1095 = vmatprep.subr.mxu0 %v1023
    %1096 = vmatpush1.msra.mxu0 %v1022
    %1097 = vmatprep.subr.mxu0 %v1019
    %1098 = vmatpush1.msra.mxu0 %v1018
    %1099 = vmatprep.subr.mxu0 %v1015
    %1100 = vmatpush1.msra.mxu0 %v1014
    %1101 = vmatprep.subr.mxu0 %v1011
    %1102 = vmatpush1.msra.mxu0 %v1010
    %1103 = vmatprep.subr.mxu0 %v1007
    %1104 = vmatpush1.msra.mxu0 %v1006
    %1105 = vmatprep.subr.mxu0 0.0
    %1106 = vmatpush2.msra.mxu0 0.0
    %1107 = vmatprep.subr.mxu0 0.0
    %1108 = vmatpush2.msra.mxu0 0.0
    %1109 = vmatprep.subr.mxu0 0.0
    %1110 = vmatpush2.msra.mxu0 0.0
    %1111 = vmatprep.subr.mxu0 0.0
    %1112 = vmatpush2.msra.mxu0 0.0
    %1113 = vmatprep.subr.mxu0 0.0
    %1114 = vmatpush2.msra.mxu0 0.0
    %1115 = vmatprep.subr.mxu0 0.0
    %1116 = vmatpush2.msra.mxu0 0.0
    %1117 = vmatprep.subr.mxu0 0.0
    %1118 = vmatpush2.msra.mxu0 0.0
    %1119 = vmatprep.subr.mxu0 0.0
    %1120 = vmatpush2.msra.mxu0 0.0
    %1121 = vmatprep.subr.mxu0 0.0
    %1122 = vmatpush2.msra.mxu0 0.0
    %1123 = vmatprep.subr.mxu0 0.0
    %1124 = vmatpush2.msra.mxu0 0.0
    %1125 = vmatprep.subr.mxu0 0.0
    %1126 = vmatpush2.msra.mxu0 0.0
    %1127 = vmatprep.subr.mxu0 0.0
    %1128 = vmatpush2.msra.mxu0 0.0
    %1129 = vmatprep.subr.mxu0 0.0
    %1130 = vmatpush2.msra.mxu0 0.0
    %1131 = vmatprep.subr.mxu0 0.0
    %1132 = vmatpush2.msra.mxu0 0.0
    %1133 = vmatprep.subr.mxu0 0.0
    %1134 = vmatpush2.msra.mxu0 0.0
    %1135 = vmatprep.subr.mxu0 0.0
    %1136 = vmatpush2.msra.mxu0 0.0
    %1137 = vmatprep.mubr.f32.mxu0 0.0
    %1138 = vmatmul.mubr.f32.gmra.mxu0 %v1071
    %v1139 = vpop.f32.mrf.mxu0
    %v1140 = vadd.f32 0.0, %v1139
    %v1141 = vpop.f32.mrf.mxu0
    %v1142 = vadd.f32 0.0, %v1141
    %1143 = vdwg.mxu0
    %1144 = vmatprep.subr.mxu0 %v1069
    %1145 = vmatpush1.msra.mxu0 %v1068
    %1146 = vmatprep.subr.mxu0 %v1065
    %1147 = vmatpush1.msra.mxu0 %v1064
    %1148 = vmatprep.subr.mxu0 %v1061
    %1149 = vmatpush1.msra.mxu0 %v1060
    %1150 = vmatprep.subr.mxu0 %v1057
    %1151 = vmatpush1.msra.mxu0 %v1056
    %1152 = vmatprep.subr.mxu0 %v1053
    %1153 = vmatpush1.msra.mxu0 %v1052
    %1154 = vmatprep.subr.mxu0 %v1049
    %1155 = vmatpush1.msra.mxu0 %v1048
    %1156 = vmatprep.subr.mxu0 %v1045
    %1157 = vmatpush1.msra.mxu0 %v1044
    %1158 = vmatprep.subr.mxu0 %v1041
    %1159 = vmatpush1.msra.mxu0 %v1040
    %1160 = vmatprep.subr.mxu0 %v1037
    %1161 = vmatpush1.msra.mxu0 %v1036
    %1162 = vmatprep.subr.mxu0 %v1033
    %1163 = vmatpush1.msra.mxu0 %v1032
    %1164 = vmatprep.subr.mxu0 %v1029
    %1165 = vmatpush1.msra.mxu0 %v1028
    %1166 = vmatprep.subr.mxu0 %v1025
    %1167 = vmatpush1.msra.mxu0 %v1024
    %1168 = vmatprep.subr.mxu0 %v1021
    %1169 = vmatpush1.msra.mxu0 %v1020
    %1170 = vmatprep.subr.mxu0 %v1017
    %1171 = vmatpush1.msra.mxu0 %v1016
    %1172 = vmatprep.subr.mxu0 %v1013
    %1173 = vmatpush1.msra.mxu0 %v1012
    %1174 = vmatprep.subr.mxu0 %v1009
    %1175 = vmatpush1.msra.mxu0 %v1008
    %1176 = vmatprep.subr.mxu0 0.0
    %1177 = vmatpush2.msra.mxu0 0.0
    %1178 = vmatprep.subr.mxu0 0.0
    %1179 = vmatpush2.msra.mxu0 0.0
    %1180 = vmatprep.subr.mxu0 0.0
    %1181 = vmatpush2.msra.mxu0 0.0
    %1182 = vmatprep.subr.mxu0 0.0
    %1183 = vmatpush2.msra.mxu0 0.0
    %1184 = vmatprep.subr.mxu0 0.0
    %1185 = vmatpush2.msra.mxu0 0.0
    %1186 = vmatprep.subr.mxu0 0.0
    %1187 = vmatpush2.msra.mxu0 0.0
    %1188 = vmatprep.subr.mxu0 0.0
    %1189 = vmatpush2.msra.mxu0 0.0
    %1190 = vmatprep.subr.mxu0 0.0
    %1191 = vmatpush2.msra.mxu0 0.0
    %1192 = vmatprep.subr.mxu0 0.0
    %1193 = vmatpush2.msra.mxu0 0.0
    %1194 = vmatprep.subr.mxu0 0.0
    %1195 = vmatpush2.msra.mxu0 0.0
    %1196 = vmatprep.subr.mxu0 0.0
    %1197 = vmatpush2.msra.mxu0 0.0
    %1198 = vmatprep.subr.mxu0 0.0
    %1199 = vmatpush2.msra.mxu0 0.0
    %1200 = vmatprep.subr.mxu0 0.0
    %1201 = vmatpush2.msra.mxu0 0.0
    %1202 = vmatprep.subr.mxu0 0.0
    %1203 = vmatpush2.msra.mxu0 0.0
    %1204 = vmatprep.subr.mxu0 0.0
    %1205 = vmatpush2.msra.mxu0 0.0
    %1206 = vmatprep.subr.mxu0 0.0
    %1207 = vmatpush2.msra.mxu0 0.0
    %1208 = vmatprep.mubr.f32.mxu0 0.0
    %1209 = vmatmul.mubr.f32.gmra.mxu0 %v1071
    %v1210 = vpop.f32.mrf.mxu0
    %v1211 = vadd.f32 0.0, %v1210
    %v1212 = vpop.f32.mrf.mxu0
    %v1213 = vadd.f32 0.0, %v1212
    %1214 = vdwg.mxu0
    %v1219 = vrot.slane %v1140, 2
    %v1220 = vrot.slane %v1142, 2
    %v1221 = vrot.slane %v1211, 2
    %v1222 = vrot.slane %v1213, 2
    %v1227 = vadd.f32 %v181, %v1219
    %v1228 = vadd.f32 %v183, %v1220
    %v1229 = vadd.f32 %v258, %v1221
    %v1230 = vadd.f32 %v260, %v1222
    %v1231 = vxor.u32 %v1227, 2147483648
    %v1232 = vmul.f32 %v1231, 1.442695
    %v1233 = vpow.pop %v1232
    %v1234 = vadd.f32 %v1233, 1.0
    %v1235 = vrcp.pop %v1234
    %v1236 = vmul.f32 1.0, %v1235
    %v1237 = vxor.u32 %v1228, 2147483648
    %v1238 = vmul.f32 %v1237, 1.442695
    %v1239 = vpow.pop %v1238
    %v1240 = vadd.f32 %v1239, 1.0
    %v1241 = vrcp.pop %v1240
    %v1242 = vmul.f32 1.0, %v1241
    %v1243 = vxor.u32 %v1229, 2147483648
    %v1244 = vmul.f32 %v1243, 1.442695
    %v1245 = vpow.pop %v1244
    %v1246 = vadd.f32 %v1245, 1.0
    %v1247 = vrcp.pop %v1246
    %v1248 = vmul.f32 1.0, %v1247
    %v1249 = vtanh.pop %v1230
    %v1250 = vmul.f32 %v1242, %v1249
    %v1252 = vrot.slane %v1002, 6
    %v1254 = vmul.f32 %v1236, %v1252
    %v1255 = vadd.f32 %v1250, %v1254
    %v1256 = vtanh.pop %v1255
    %v1257 = vmul.f32 %v1248, %v1256
    %1258 = vst [vmem:[#allocation2] sm:$0xc0] %v1257
    %v1259 = vld [vmem:[#allocation3] sm:$0xff]
    %v1260 = vld [vmem:[#allocation3 + $0x8] sm:$0xff]
    %v1261 = vld [vmem:[#allocation3 + $0x10] sm:$0xff]
    %v1262 = vld [vmem:[#allocation3 + $0x18] sm:$0xff]
    %v1263 = vld [vmem:[#allocation3 + $0x20] sm:$0xff]
    %v1264 = vld [vmem:[#allocation3 + $0x28] sm:$0xff]
    %v1265 = vld [vmem:[#allocation3 + $0x30] sm:$0xff]
    %v1266 = vld [vmem:[#allocation3 + $0x38] sm:$0xff]
    %v1267 = vld [vmem:[#allocation3 + $0x40] sm:$0xff]
    %v1268 = vld [vmem:[#allocation3 + $0x48] sm:$0xff]
    %v1269 = vld [vmem:[#allocation3 + $0x50] sm:$0xff]
    %v1270 = vld [vmem:[#allocation3 + $0x58] sm:$0xff]
    %v1271 = vld [vmem:[#allocation3 + $0x60] sm:$0xff]
    %v1272 = vld [vmem:[#allocation3 + $0x68] sm:$0xff]
    %v1273 = vld [vmem:[#allocation3 + $0x70] sm:$0xff]
    %v1274 = vld [vmem:[#allocation3 + $0x78] sm:$0xff]
    %v1275 = vld [vmem:[#allocation3 + $0x80] sm:$0xff]
    %v1276 = vld [vmem:[#allocation3 + $0x88] sm:$0xff]
    %v1277 = vld [vmem:[#allocation3 + $0x90] sm:$0xff]
    %v1278 = vld [vmem:[#allocation3 + $0x98] sm:$0xff]
    %v1279 = vld [vmem:[#allocation3 + $0xa0] sm:$0xff]
    %v1280 = vld [vmem:[#allocation3 + $0xa8] sm:$0xff]
    %v1281 = vld [vmem:[#allocation3 + $0xb0] sm:$0xff]
    %v1282 = vld [vmem:[#allocation3 + $0xb8] sm:$0xff]
    %v1283 = vld [vmem:[#allocation3 + $0xc0] sm:$0xff]
    %v1284 = vld [vmem:[#allocation3 + $0xc8] sm:$0xff]
    %v1285 = vld [vmem:[#allocation3 + $0xd0] sm:$0xff]
    %v1286 = vld [vmem:[#allocation3 + $0xd8] sm:$0xff]
    %v1287 = vld [vmem:[#allocation3 + $0xe0] sm:$0xff]
    %v1288 = vld [vmem:[#allocation3 + $0xe8] sm:$0xff]
    %v1289 = vld [vmem:[#allocation3 + $0xf0] sm:$0xff]
    %v1290 = vld [vmem:[#allocation3 + $0xf8] sm:$0xff]
    %v1291 = vld [vmem:[#allocation3 + $0x100] sm:$0xff]
    %v1292 = vld [vmem:[#allocation3 + $0x108] sm:$0xff]
    %v1293 = vld [vmem:[#allocation3 + $0x110] sm:$0xff]
    %v1294 = vld [vmem:[#allocation3 + $0x118] sm:$0xff]
    %v1295 = vld [vmem:[#allocation3 + $0x120] sm:$0xff]
    %v1296 = vld [vmem:[#allocation3 + $0x128] sm:$0xff]
    %v1297 = vld [vmem:[#allocation3 + $0x130] sm:$0xff]
    %v1298 = vld [vmem:[#allocation3 + $0x138] sm:$0xff]
    %v1299 = vld [vmem:[#allocation3 + $0x140] sm:$0xff]
    %v1300 = vld [vmem:[#allocation3 + $0x148] sm:$0xff]
    %v1301 = vld [vmem:[#allocation3 + $0x150] sm:$0xff]
    %v1302 = vld [vmem:[#allocation3 + $0x158] sm:$0xff]
    %v1303 = vld [vmem:[#allocation3 + $0x160] sm:$0xff]
    %v1304 = vld [vmem:[#allocation3 + $0x168] sm:$0xff]
    %v1305 = vld [vmem:[#allocation3 + $0x170] sm:$0xff]
    %v1306 = vld [vmem:[#allocation3 + $0x178] sm:$0xff]
    %v1307 = vld [vmem:[#allocation3 + $0x180] sm:$0xff]
    %v1308 = vld [vmem:[#allocation3 + $0x188] sm:$0xff]
    %v1309 = vld [vmem:[#allocation3 + $0x190] sm:$0xff]
    %v1310 = vld [vmem:[#allocation3 + $0x198] sm:$0xff]
    %v1311 = vld [vmem:[#allocation3 + $0x1a0] sm:$0xff]
    %v1312 = vld [vmem:[#allocation3 + $0x1a8] sm:$0xff]
    %v1313 = vld [vmem:[#allocation3 + $0x1b0] sm:$0xff]
    %v1314 = vld [vmem:[#allocation3 + $0x1b8] sm:$0xff]
    %v1315 = vld [vmem:[#allocation3 + $0x1c0] sm:$0xff]
    %v1316 = vld [vmem:[#allocation3 + $0x1c8] sm:$0xff]
    %v1317 = vld [vmem:[#allocation3 + $0x1d0] sm:$0xff]
    %v1318 = vld [vmem:[#allocation3 + $0x1d8] sm:$0xff]
    %v1319 = vld [vmem:[#allocation3 + $0x1e0] sm:$0xff]
    %v1320 = vld [vmem:[#allocation3 + $0x1e8] sm:$0xff]
    %v1321 = vld [vmem:[#allocation3 + $0x1f0] sm:$0xff]
    %v1322 = vld [vmem:[#allocation3 + $0x1f8] sm:$0xff]
    %v1324 = vrot.slane %v1257, 6
    %1326 = vmatprep.subr.mxu0 %v1320
    %1327 = vmatpush1.msra.mxu0 %v1319
    %1328 = vmatprep.subr.mxu0 %v1316
    %1329 = vmatpush1.msra.mxu0 %v1315
    %1330 = vmatprep.subr.mxu0 %v1312
    %1331 = vmatpush1.msra.mxu0 %v1311
    %1332 = vmatprep.subr.mxu0 %v1308
    %1333 = vmatpush1.msra.mxu0 %v1307
    %1334 = vmatprep.subr.mxu0 %v1304
    %1335 = vmatpush1.msra.mxu0 %v1303
    %1336 = vmatprep.subr.mxu0 %v1300
    %1337 = vmatpush1.msra.mxu0 %v1299
    %1338 = vmatprep.subr.mxu0 %v1296
    %1339 = vmatpush1.msra.mxu0 %v1295
    %1340 = vmatprep.subr.mxu0 %v1292
    %1341 = vmatpush1.msra.mxu0 %v1291
    %1342 = vmatprep.subr.mxu0 %v1288
    %1343 = vmatpush1.msra.mxu0 %v1287
    %1344 = vmatprep.subr.mxu0 %v1284
    %1345 = vmatpush1.msra.mxu0 %v1283
    %1346 = vmatprep.subr.mxu0 %v1280
    %1347 = vmatpush1.msra.mxu0 %v1279
    %1348 = vmatprep.subr.mxu0 %v1276
    %1349 = vmatpush1.msra.mxu0 %v1275
    %1350 = vmatprep.subr.mxu0 %v1272
    %1351 = vmatpush1.msra.mxu0 %v1271
    %1352 = vmatprep.subr.mxu0 %v1268
    %1353 = vmatpush1.msra.mxu0 %v1267
    %1354 = vmatprep.subr.mxu0 %v1264
    %1355 = vmatpush1.msra.mxu0 %v1263
    %1356 = vmatprep.subr.mxu0 %v1260
    %1357 = vmatpush1.msra.mxu0 %v1259
    %1358 = vmatprep.subr.mxu0 0.0
    %1359 = vmatpush2.msra.mxu0 0.0
    %1360 = vmatprep.subr.mxu0 0.0
    %1361 = vmatpush2.msra.mxu0 0.0
    %1362 = vmatprep.subr.mxu0 0.0
    %1363 = vmatpush2.msra.mxu0 0.0
    %1364 = vmatprep.subr.mxu0 0.0
    %1365 = vmatpush2.msra.mxu0 0.0
    %1366 = vmatprep.subr.mxu0 0.0
    %1367 = vmatpush2.msra.mxu0 0.0
    %1368 = vmatprep.subr.mxu0 0.0
    %1369 = vmatpush2.msra.mxu0 0.0
    %1370 = vmatprep.subr.mxu0 0.0
    %1371 = vmatpush2.msra.mxu0 0.0
    %1372 = vmatprep.subr.mxu0 0.0
    %1373 = vmatpush2.msra.mxu0 0.0
    %1374 = vmatprep.subr.mxu0 0.0
    %1375 = vmatpush2.msra.mxu0 0.0
    %1376 = vmatprep.subr.mxu0 0.0
    %1377 = vmatpush2.msra.mxu0 0.0
    %1378 = vmatprep.subr.mxu0 0.0
    %1379 = vmatpush2.msra.mxu0 0.0
    %1380 = vmatprep.subr.mxu0 0.0
    %1381 = vmatpush2.msra.mxu0 0.0
    %1382 = vmatprep.subr.mxu0 0.0
    %1383 = vmatpush2.msra.mxu0 0.0
    %1384 = vmatprep.subr.mxu0 0.0
    %1385 = vmatpush2.msra.mxu0 0.0
    %1386 = vmatprep.subr.mxu0 0.0
    %1387 = vmatpush2.msra.mxu0 0.0
    %1388 = vmatprep.subr.mxu0 0.0
    %1389 = vmatpush2.msra.mxu0 0.0
    %1390 = vmatprep.mubr.f32.mxu0 0.0
    %1391 = vmatmul.mubr.f32.gmra.mxu0 %v1324
    %v1392 = vpop.f32.mrf.mxu0
    %v1393 = vadd.f32 0.0, %v1392
    %v1394 = vpop.f32.mrf.mxu0
    %v1395 = vadd.f32 0.0, %v1394
    %1396 = vdwg.mxu0
    %1397 = vmatprep.subr.mxu0 %v1322
    %1398 = vmatpush1.msra.mxu0 %v1321
    %1399 = vmatprep.subr.mxu0 %v1318
    %1400 = vmatpush1.msra.mxu0 %v1317
    %1401 = vmatprep.subr.mxu0 %v1314
    %1402 = vmatpush1.msra.mxu0 %v1313
    %1403 = vmatprep.subr.mxu0 %v1310
    %1404 = vmatpush1.msra.mxu0 %v1309
    %1405 = vmatprep.subr.mxu0 %v1306
    %1406 = vmatpush1.msra.mxu0 %v1305
    %1407 = vmatprep.subr.mxu0 %v1302
    %1408 = vmatpush1.msra.mxu0 %v1301
    %1409 = vmatprep.subr.mxu0 %v1298
    %1410 = vmatpush1.msra.mxu0 %v1297
    %1411 = vmatprep.subr.mxu0 %v1294
    %1412 = vmatpush1.msra.mxu0 %v1293
    %1413 = vmatprep.subr.mxu0 %v1290
    %1414 = vmatpush1.msra.mxu0 %v1289
    %1415 = vmatprep.subr.mxu0 %v1286
    %1416 = vmatpush1.msra.mxu0 %v1285
    %1417 = vmatprep.subr.mxu0 %v1282
    %1418 = vmatpush1.msra.mxu0 %v1281
    %1419 = vmatprep.subr.mxu0 %v1278
    %1420 = vmatpush1.msra.mxu0 %v1277
    %1421 = vmatprep.subr.mxu0 %v1274
    %1422 = vmatpush1.msra.mxu0 %v1273
    %1423 = vmatprep.subr.mxu0 %v1270
    %1424 = vmatpush1.msra.mxu0 %v1269
    %1425 = vmatprep.subr.mxu0 %v1266
    %1426 = vmatpush1.msra.mxu0 %v1265
    %1427 = vmatprep.subr.mxu0 %v1262
    %1428 = vmatpush1.msra.mxu0 %v1261
    %1429 = vmatprep.subr.mxu0 0.0
    %1430 = vmatpush2.msra.mxu0 0.0
    %1431 = vmatprep.subr.mxu0 0.0
    %1432 = vmatpush2.msra.mxu0 0.0
    %1433 = vmatprep.subr.mxu0 0.0
    %1434 = vmatpush2.msra.mxu0 0.0
    %1435 = vmatprep.subr.mxu0 0.0
    %1436 = vmatpush2.msra.mxu0 0.0
    %1437 = vmatprep.subr.mxu0 0.0
    %1438 = vmatpush2.msra.mxu0 0.0
    %1439 = vmatprep.subr.mxu0 0.0
    %1440 = vmatpush2.msra.mxu0 0.0
    %1441 = vmatprep.subr.mxu0 0.0
    %1442 = vmatpush2.msra.mxu0 0.0
    %1443 = vmatprep.subr.mxu0 0.0
    %1444 = vmatpush2.msra.mxu0 0.0
    %1445 = vmatprep.subr.mxu0 0.0
    %1446 = vmatpush2.msra.mxu0 0.0
    %1447 = vmatprep.subr.mxu0 0.0
    %1448 = vmatpush2.msra.mxu0 0.0
    %1449 = vmatprep.subr.mxu0 0.0
    %1450 = vmatpush2.msra.mxu0 0.0
    %1451 = vmatprep.subr.mxu0 0.0
    %1452 = vmatpush2.msra.mxu0 0.0
    %1453 = vmatprep.subr.mxu0 0.0
    %1454 = vmatpush2.msra.mxu0 0.0
    %1455 = vmatprep.subr.mxu0 0.0
    %1456 = vmatpush2.msra.mxu0 0.0
    %1457 = vmatprep.subr.mxu0 0.0
    %1458 = vmatpush2.msra.mxu0 0.0
    %1459 = vmatprep.subr.mxu0 0.0
    %1460 = vmatpush2.msra.mxu0 0.0
    %1461 = vmatprep.mubr.f32.mxu0 0.0
    %1462 = vmatmul.mubr.f32.gmra.mxu0 %v1324
    %v1463 = vpop.f32.mrf.mxu0
    %v1464 = vadd.f32 0.0, %v1463
    %v1465 = vpop.f32.mrf.mxu0
    %v1466 = vadd.f32 0.0, %v1465
    %1467 = vdwg.mxu0
    %v1468 = vadd.f32 %v187, %v1393
    %v1469 = vadd.f32 %v189, %v1395
    %v1470 = vadd.f32 %v264, %v1464
    %v1471 = vadd.f32 %v266, %v1466
    %v1472 = vxor.u32 %v1468, 2147483648
    %v1473 = vmul.f32 %v1472, 1.442695
    %v1474 = vpow.pop %v1473
    %v1475 = vadd.f32 %v1474, 1.0
    %v1476 = vrcp.pop %v1475
    %v1477 = vmul.f32 1.0, %v1476
    %v1478 = vxor.u32 %v1469, 2147483648
    %v1479 = vmul.f32 %v1478, 1.442695
    %v1480 = vpow.pop %v1479
    %v1481 = vadd.f32 %v1480, 1.0
    %v1482 = vrcp.pop %v1481
    %v1483 = vmul.f32 1.0, %v1482
    %v1484 = vxor.u32 %v1470, 2147483648
    %v1485 = vmul.f32 %v1484, 1.442695
    %v1486 = vpow.pop %v1485
    %v1487 = vadd.f32 %v1486, 1.0
    %v1488 = vrcp.pop %v1487
    %v1489 = vmul.f32 1.0, %v1488
    %v1490 = vtanh.pop %v1471
    %v1491 = vmul.f32 %v1483, %v1490
    %v1493 = vrot.slane %v1255, 6
    %v1495 = vmul.f32 %v1477, %v1493
    %v1496 = vadd.f32 %v1491, %v1495
    %v1497 = vtanh.pop %v1496
    %v1498 = vmul.f32 %v1489, %v1497
    %1499 = vst [vmem:[#allocation2 + $0x8] sm:$0x3] %v1498
    %v1500 = vld [vmem:[#allocation3] sm:$0xff]
    %v1501 = vld [vmem:[#allocation3 + $0x8] sm:$0xff]
    %v1502 = vld [vmem:[#allocation3 + $0x10] sm:$0xff]
    %v1503 = vld [vmem:[#allocation3 + $0x18] sm:$0xff]
    %v1504 = vld [vmem:[#allocation3 + $0x20] sm:$0xff]
    %v1505 = vld [vmem:[#allocation3 + $0x28] sm:$0xff]
    %v1506 = vld [vmem:[#allocation3 + $0x30] sm:$0xff]
    %v1507 = vld [vmem:[#allocation3 + $0x38] sm:$0xff]
    %v1508 = vld [vmem:[#allocation3 + $0x40] sm:$0xff]
    %v1509 = vld [vmem:[#allocation3 + $0x48] sm:$0xff]
    %v1510 = vld [vmem:[#allocation3 + $0x50] sm:$0xff]
    %v1511 = vld [vmem:[#allocation3 + $0x58] sm:$0xff]
    %v1512 = vld [vmem:[#allocation3 + $0x60] sm:$0xff]
    %v1513 = vld [vmem:[#allocation3 + $0x68] sm:$0xff]
    %v1514 = vld [vmem:[#allocation3 + $0x70] sm:$0xff]
    %v1515 = vld [vmem:[#allocation3 + $0x78] sm:$0xff]
    %v1516 = vld [vmem:[#allocation3 + $0x80] sm:$0xff]
    %v1517 = vld [vmem:[#allocation3 + $0x88] sm:$0xff]
    %v1518 = vld [vmem:[#allocation3 + $0x90] sm:$0xff]
    %v1519 = vld [vmem:[#allocation3 + $0x98] sm:$0xff]
    %v1520 = vld [vmem:[#allocation3 + $0xa0] sm:$0xff]
    %v1521 = vld [vmem:[#allocation3 + $0xa8] sm:$0xff]
    %v1522 = vld [vmem:[#allocation3 + $0xb0] sm:$0xff]
    %v1523 = vld [vmem:[#allocation3 + $0xb8] sm:$0xff]
    %v1524 = vld [vmem:[#allocation3 + $0xc0] sm:$0xff]
    %v1525 = vld [vmem:[#allocation3 + $0xc8] sm:$0xff]
    %v1526 = vld [vmem:[#allocation3 + $0xd0] sm:$0xff]
    %v1527 = vld [vmem:[#allocation3 + $0xd8] sm:$0xff]
    %v1528 = vld [vmem:[#allocation3 + $0xe0] sm:$0xff]
    %v1529 = vld [vmem:[#allocation3 + $0xe8] sm:$0xff]
    %v1530 = vld [vmem:[#allocation3 + $0xf0] sm:$0xff]
    %v1531 = vld [vmem:[#allocation3 + $0xf8] sm:$0xff]
    %v1532 = vld [vmem:[#allocation3 + $0x100] sm:$0xff]
    %v1533 = vld [vmem:[#allocation3 + $0x108] sm:$0xff]
    %v1534 = vld [vmem:[#allocation3 + $0x110] sm:$0xff]
    %v1535 = vld [vmem:[#allocation3 + $0x118] sm:$0xff]
    %v1536 = vld [vmem:[#allocation3 + $0x120] sm:$0xff]
    %v1537 = vld [vmem:[#allocation3 + $0x128] sm:$0xff]
    %v1538 = vld [vmem:[#allocation3 + $0x130] sm:$0xff]
    %v1539 = vld [vmem:[#allocation3 + $0x138] sm:$0xff]
    %v1540 = vld [vmem:[#allocation3 + $0x140] sm:$0xff]
    %v1541 = vld [vmem:[#allocation3 + $0x148] sm:$0xff]
    %v1542 = vld [vmem:[#allocation3 + $0x150] sm:$0xff]
    %v1543 = vld [vmem:[#allocation3 + $0x158] sm:$0xff]
    %v1544 = vld [vmem:[#allocation3 + $0x160] sm:$0xff]
    %v1545 = vld [vmem:[#allocation3 + $0x168] sm:$0xff]
    %v1546 = vld [vmem:[#allocation3 + $0x170] sm:$0xff]
    %v1547 = vld [vmem:[#allocation3 + $0x178] sm:$0xff]
    %v1548 = vld [vmem:[#allocation3 + $0x180] sm:$0xff]
    %v1549 = vld [vmem:[#allocation3 + $0x188] sm:$0xff]
    %v1550 = vld [vmem:[#allocation3 + $0x190] sm:$0xff]
    %v1551 = vld [vmem:[#allocation3 + $0x198] sm:$0xff]
    %v1552 = vld [vmem:[#allocation3 + $0x1a0] sm:$0xff]
    %v1553 = vld [vmem:[#allocation3 + $0x1a8] sm:$0xff]
    %v1554 = vld [vmem:[#allocation3 + $0x1b0] sm:$0xff]
    %v1555 = vld [vmem:[#allocation3 + $0x1b8] sm:$0xff]
    %v1556 = vld [vmem:[#allocation3 + $0x1c0] sm:$0xff]
    %v1557 = vld [vmem:[#allocation3 + $0x1c8] sm:$0xff]
    %v1558 = vld [vmem:[#allocation3 + $0x1d0] sm:$0xff]
    %v1559 = vld [vmem:[#allocation3 + $0x1d8] sm:$0xff]
    %v1560 = vld [vmem:[#allocation3 + $0x1e0] sm:$0xff]
    %v1561 = vld [vmem:[#allocation3 + $0x1e8] sm:$0xff]
    %v1562 = vld [vmem:[#allocation3 + $0x1f0] sm:$0xff]
    %v1563 = vld [vmem:[#allocation3 + $0x1f8] sm:$0xff]
    %1564 = vmatprep.subr.mxu0 %v1561
    %1565 = vmatpush1.msra.mxu0 %v1560
    %1566 = vmatprep.subr.mxu0 %v1557
    %1567 = vmatpush1.msra.mxu0 %v1556
    %1568 = vmatprep.subr.mxu0 %v1553
    %1569 = vmatpush1.msra.mxu0 %v1552
    %1570 = vmatprep.subr.mxu0 %v1549
    %1571 = vmatpush1.msra.mxu0 %v1548
    %1572 = vmatprep.subr.mxu0 %v1545
    %1573 = vmatpush1.msra.mxu0 %v1544
    %1574 = vmatprep.subr.mxu0 %v1541
    %1575 = vmatpush1.msra.mxu0 %v1540
    %1576 = vmatprep.subr.mxu0 %v1537
    %1577 = vmatpush1.msra.mxu0 %v1536
    %1578 = vmatprep.subr.mxu0 %v1533
    %1579 = vmatpush1.msra.mxu0 %v1532
    %1580 = vmatprep.subr.mxu0 %v1529
    %1581 = vmatpush1.msra.mxu0 %v1528
    %1582 = vmatprep.subr.mxu0 %v1525
    %1583 = vmatpush1.msra.mxu0 %v1524
    %1584 = vmatprep.subr.mxu0 %v1521
    %1585 = vmatpush1.msra.mxu0 %v1520
    %1586 = vmatprep.subr.mxu0 %v1517
    %1587 = vmatpush1.msra.mxu0 %v1516
    %1588 = vmatprep.subr.mxu0 %v1513
    %1589 = vmatpush1.msra.mxu0 %v1512
    %1590 = vmatprep.subr.mxu0 %v1509
    %1591 = vmatpush1.msra.mxu0 %v1508
    %1592 = vmatprep.subr.mxu0 %v1505
    %1593 = vmatpush1.msra.mxu0 %v1504
    %1594 = vmatprep.subr.mxu0 %v1501
    %1595 = vmatpush1.msra.mxu0 %v1500
    %1596 = vmatprep.subr.mxu0 0.0
    %1597 = vmatpush2.msra.mxu0 0.0
    %1598 = vmatprep.subr.mxu0 0.0
    %1599 = vmatpush2.msra.mxu0 0.0
    %1600 = vmatprep.subr.mxu0 0.0
    %1601 = vmatpush2.msra.mxu0 0.0
    %1602 = vmatprep.subr.mxu0 0.0
    %1603 = vmatpush2.msra.mxu0 0.0
    %1604 = vmatprep.subr.mxu0 0.0
    %1605 = vmatpush2.msra.mxu0 0.0
    %1606 = vmatprep.subr.mxu0 0.0
    %1607 = vmatpush2.msra.mxu0 0.0
    %1608 = vmatprep.subr.mxu0 0.0
    %1609 = vmatpush2.msra.mxu0 0.0
    %1610 = vmatprep.subr.mxu0 0.0
    %1611 = vmatpush2.msra.mxu0 0.0
    %1612 = vmatprep.subr.mxu0 0.0
    %1613 = vmatpush2.msra.mxu0 0.0
    %1614 = vmatprep.subr.mxu0 0.0
    %1615 = vmatpush2.msra.mxu0 0.0
    %1616 = vmatprep.subr.mxu0 0.0
    %1617 = vmatpush2.msra.mxu0 0.0
    %1618 = vmatprep.subr.mxu0 0.0
    %1619 = vmatpush2.msra.mxu0 0.0
    %1620 = vmatprep.subr.mxu0 0.0
    %1621 = vmatpush2.msra.mxu0 0.0
    %1622 = vmatprep.subr.mxu0 0.0
    %1623 = vmatpush2.msra.mxu0 0.0
    %1624 = vmatprep.subr.mxu0 0.0
    %1625 = vmatpush2.msra.mxu0 0.0
    %1626 = vmatprep.subr.mxu0 0.0
    %1627 = vmatpush2.msra.mxu0 0.0
    %1628 = vmatprep.mubr.f32.mxu0 0.0
    %1629 = vmatmul.mubr.f32.gmra.mxu0 %v1498
    %v1630 = vpop.f32.mrf.mxu0
    %v1631 = vadd.f32 0.0, %v1630
    %v1632 = vpop.f32.mrf.mxu0
    %v1633 = vadd.f32 0.0, %v1632
    %1634 = vdwg.mxu0
    %1635 = vmatprep.subr.mxu0 %v1563
    %1636 = vmatpush1.msra.mxu0 %v1562
    %1637 = vmatprep.subr.mxu0 %v1559
    %1638 = vmatpush1.msra.mxu0 %v1558
    %1639 = vmatprep.subr.mxu0 %v1555
    %1640 = vmatpush1.msra.mxu0 %v1554
    %1641 = vmatprep.subr.mxu0 %v1551
    %1642 = vmatpush1.msra.mxu0 %v1550
    %1643 = vmatprep.subr.mxu0 %v1547
    %1644 = vmatpush1.msra.mxu0 %v1546
    %1645 = vmatprep.subr.mxu0 %v1543
    %1646 = vmatpush1.msra.mxu0 %v1542
    %1647 = vmatprep.subr.mxu0 %v1539
    %1648 = vmatpush1.msra.mxu0 %v1538
    %1649 = vmatprep.subr.mxu0 %v1535
    %1650 = vmatpush1.msra.mxu0 %v1534
    %1651 = vmatprep.subr.mxu0 %v1531
    %1652 = vmatpush1.msra.mxu0 %v1530
    %1653 = vmatprep.subr.mxu0 %v1527
    %1654 = vmatpush1.msra.mxu0 %v1526
    %1655 = vmatprep.subr.mxu0 %v1523
    %1656 = vmatpush1.msra.mxu0 %v1522
    %1657 = vmatprep.subr.mxu0 %v1519
    %1658 = vmatpush1.msra.mxu0 %v1518
    %1659 = vmatprep.subr.mxu0 %v1515
    %1660 = vmatpush1.msra.mxu0 %v1514
    %1661 = vmatprep.subr.mxu0 %v1511
    %1662 = vmatpush1.msra.mxu0 %v1510
    %1663 = vmatprep.subr.mxu0 %v1507
    %1664 = vmatpush1.msra.mxu0 %v1506
    %1665 = vmatprep.subr.mxu0 %v1503
    %1666 = vmatpush1.msra.mxu0 %v1502
    %1667 = vmatprep.subr.mxu0 0.0
    %1668 = vmatpush2.msra.mxu0 0.0
    %1669 = vmatprep.subr.mxu0 0.0
    %1670 = vmatpush2.msra.mxu0 0.0
    %1671 = vmatprep.subr.mxu0 0.0
    %1672 = vmatpush2.msra.mxu0 0.0
    %1673 = vmatprep.subr.mxu0 0.0
    %1674 = vmatpush2.msra.mxu0 0.0
    %1675 = vmatprep.subr.mxu0 0.0
    %1676 = vmatpush2.msra.mxu0 0.0
    %1677 = vmatprep.subr.mxu0 0.0
    %1678 = vmatpush2.msra.mxu0 0.0
    %1679 = vmatprep.subr.mxu0 0.0
    %1680 = vmatpush2.msra.mxu0 0.0
    %1681 = vmatprep.subr.mxu0 0.0
    %1682 = vmatpush2.msra.mxu0 0.0
    %1683 = vmatprep.subr.mxu0 0.0
    %1684 = vmatpush2.msra.mxu0 0.0
    %1685 = vmatprep.subr.mxu0 0.0
    %1686 = vmatpush2.msra.mxu0 0.0
    %1687 = vmatprep.subr.mxu0 0.0
    %1688 = vmatpush2.msra.mxu0 0.0
    %1689 = vmatprep.subr.mxu0 0.0
    %1690 = vmatpush2.msra.mxu0 0.0
    %1691 = vmatprep.subr.mxu0 0.0
    %1692 = vmatpush2.msra.mxu0 0.0
    %1693 = vmatprep.subr.mxu0 0.0
    %1694 = vmatpush2.msra.mxu0 0.0
    %1695 = vmatprep.subr.mxu0 0.0
    %1696 = vmatpush2.msra.mxu0 0.0
    %1697 = vmatprep.subr.mxu0 0.0
    %1698 = vmatpush2.msra.mxu0 0.0
    %1699 = vmatprep.mubr.f32.mxu0 0.0
    %1700 = vmatmul.mubr.f32.gmra.mxu0 %v1498
    %v1701 = vpop.f32.mrf.mxu0
    %v1702 = vadd.f32 0.0, %v1701
    %v1703 = vpop.f32.mrf.mxu0
    %v1704 = vadd.f32 0.0, %v1703
    %1705 = vdwg.mxu0
    %v1710 = vrot.slane %v1631, 6
    %v1711 = vrot.slane %v1633, 6
    %v1712 = vrot.slane %v1702, 6
    %v1713 = vrot.slane %v1704, 6
    %v1718 = vadd.f32 %v187, %v1710
    %v1719 = vadd.f32 %v189, %v1711
    %v1720 = vadd.f32 %v264, %v1712
    %v1721 = vadd.f32 %v266, %v1713
    %v1722 = vxor.u32 %v1718, 2147483648
    %v1723 = vmul.f32 %v1722, 1.442695
    %v1724 = vpow.pop %v1723
    %v1725 = vadd.f32 %v1724, 1.0
    %v1726 = vrcp.pop %v1725
    %v1727 = vmul.f32 1.0, %v1726
    %v1728 = vxor.u32 %v1719, 2147483648
    %v1729 = vmul.f32 %v1728, 1.442695
    %v1730 = vpow.pop %v1729
    %v1731 = vadd.f32 %v1730, 1.0
    %v1732 = vrcp.pop %v1731
    %v1733 = vmul.f32 1.0, %v1732
    %v1734 = vxor.u32 %v1720, 2147483648
    %v1735 = vmul.f32 %v1734, 1.442695
    %v1736 = vpow.pop %v1735
    %v1737 = vadd.f32 %v1736, 1.0
    %v1738 = vrcp.pop %v1737
    %v1739 = vmul.f32 1.0, %v1738
    %v1740 = vtanh.pop %v1721
    %v1741 = vmul.f32 %v1733, %v1740
    %v1743 = vrot.slane %v1496, 6
    %v1745 = vmul.f32 %v1727, %v1743
    %v1746 = vadd.f32 %v1741, %v1745
    %v1747 = vtanh.pop %v1746
    %v1748 = vmul.f32 %v1739, %v1747
    %1749 = vst [vmem:[#allocation2 + $0x8] sm:$0xc] %v1748
    %v1750 = vld [vmem:[#allocation3] sm:$0xff]
    %v1751 = vld [vmem:[#allocation3 + $0x8] sm:$0xff]
    %v1752 = vld [vmem:[#allocation3 + $0x10] sm:$0xff]
    %v1753 = vld [vmem:[#allocation3 + $0x18] sm:$0xff]
    %v1754 = vld [vmem:[#allocation3 + $0x20] sm:$0xff]
    %v1755 = vld [vmem:[#allocation3 + $0x28] sm:$0xff]
    %v1756 = vld [vmem:[#allocation3 + $0x30] sm:$0xff]
    %v1757 = vld [vmem:[#allocation3 + $0x38] sm:$0xff]
    %v1758 = vld [vmem:[#allocation3 + $0x40] sm:$0xff]
    %v1759 = vld [vmem:[#allocation3 + $0x48] sm:$0xff]
    %v1760 = vld [vmem:[#allocation3 + $0x50] sm:$0xff]
    %v1761 = vld [vmem:[#allocation3 + $0x58] sm:$0xff]
    %v1762 = vld [vmem:[#allocation3 + $0x60] sm:$0xff]
    %v1763 = vld [vmem:[#allocation3 + $0x68] sm:$0xff]
    %v1764 = vld [vmem:[#allocation3 + $0x70] sm:$0xff]
    %v1765 = vld [vmem:[#allocation3 + $0x78] sm:$0xff]
    %v1766 = vld [vmem:[#allocation3 + $0x80] sm:$0xff]
    %v1767 = vld [vmem:[#allocation3 + $0x88] sm:$0xff]
    %v1768 = vld [vmem:[#allocation3 + $0x90] sm:$0xff]
    %v1769 = vld [vmem:[#allocation3 + $0x98] sm:$0xff]
    %v1770 = vld [vmem:[#allocation3 + $0xa0] sm:$0xff]
    %v1771 = vld [vmem:[#allocation3 + $0xa8] sm:$0xff]
    %v1772 = vld [vmem:[#allocation3 + $0xb0] sm:$0xff]
    %v1773 = vld [vmem:[#allocation3 + $0xb8] sm:$0xff]
    %v1774 = vld [vmem:[#allocation3 + $0xc0] sm:$0xff]
    %v1775 = vld [vmem:[#allocation3 + $0xc8] sm:$0xff]
    %v1776 = vld [vmem:[#allocation3 + $0xd0] sm:$0xff]
    %v1777 = vld [vmem:[#allocation3 + $0xd8] sm:$0xff]
    %v1778 = vld [vmem:[#allocation3 + $0xe0] sm:$0xff]
    %v1779 = vld [vmem:[#allocation3 + $0xe8] sm:$0xff]
    %v1780 = vld [vmem:[#allocation3 + $0xf0] sm:$0xff]
    %v1781 = vld [vmem:[#allocation3 + $0xf8] sm:$0xff]
    %v1782 = vld [vmem:[#allocation3 + $0x100] sm:$0xff]
    %v1783 = vld [vmem:[#allocation3 + $0x108] sm:$0xff]
    %v1784 = vld [vmem:[#allocation3 + $0x110] sm:$0xff]
    %v1785 = vld [vmem:[#allocation3 + $0x118] sm:$0xff]
    %v1786 = vld [vmem:[#allocation3 + $0x120] sm:$0xff]
    %v1787 = vld [vmem:[#allocation3 + $0x128] sm:$0xff]
    %v1788 = vld [vmem:[#allocation3 + $0x130] sm:$0xff]
    %v1789 = vld [vmem:[#allocation3 + $0x138] sm:$0xff]
    %v1790 = vld [vmem:[#allocation3 + $0x140] sm:$0xff]
    %v1791 = vld [vmem:[#allocation3 + $0x148] sm:$0xff]
    %v1792 = vld [vmem:[#allocation3 + $0x150] sm:$0xff]
    %v1793 = vld [vmem:[#allocation3 + $0x158] sm:$0xff]
    %v1794 = vld [vmem:[#allocation3 + $0x160] sm:$0xff]
    %v1795 = vld [vmem:[#allocation3 + $0x168] sm:$0xff]
    %v1796 = vld [vmem:[#allocation3 + $0x170] sm:$0xff]
    %v1797 = vld [vmem:[#allocation3 + $0x178] sm:$0xff]
    %v1798 = vld [vmem:[#allocation3 + $0x180] sm:$0xff]
    %v1799 = vld [vmem:[#allocation3 + $0x188] sm:$0xff]
    %v1800 = vld [vmem:[#allocation3 + $0x190] sm:$0xff]
    %v1801 = vld [vmem:[#allocation3 + $0x198] sm:$0xff]
    %v1802 = vld [vmem:[#allocation3 + $0x1a0] sm:$0xff]
    %v1803 = vld [vmem:[#allocation3 + $0x1a8] sm:$0xff]
    %v1804 = vld [vmem:[#allocation3 + $0x1b0] sm:$0xff]
    %v1805 = vld [vmem:[#allocation3 + $0x1b8] sm:$0xff]
    %v1806 = vld [vmem:[#allocation3 + $0x1c0] sm:$0xff]
    %v1807 = vld [vmem:[#allocation3 + $0x1c8] sm:$0xff]
    %v1808 = vld [vmem:[#allocation3 + $0x1d0] sm:$0xff]
    %v1809 = vld [vmem:[#allocation3 + $0x1d8] sm:$0xff]
    %v1810 = vld [vmem:[#allocation3 + $0x1e0] sm:$0xff]
    %v1811 = vld [vmem:[#allocation3 + $0x1e8] sm:$0xff]
    %v1812 = vld [vmem:[#allocation3 + $0x1f0] sm:$0xff]
    %v1813 = vld [vmem:[#allocation3 + $0x1f8] sm:$0xff]
    %v1815 = vrot.slane %v1748, 2
    %1817 = vmatprep.subr.mxu0 %v1811
    %1818 = vmatpush1.msra.mxu0 %v1810
    %1819 = vmatprep.subr.mxu0 %v1807
    %1820 = vmatpush1.msra.mxu0 %v1806
    %1821 = vmatprep.subr.mxu0 %v1803
    %1822 = vmatpush1.msra.mxu0 %v1802
    %1823 = vmatprep.subr.mxu0 %v1799
    %1824 = vmatpush1.msra.mxu0 %v1798
    %1825 = vmatprep.subr.mxu0 %v1795
    %1826 = vmatpush1.msra.mxu0 %v1794
    %1827 = vmatprep.subr.mxu0 %v1791
    %1828 = vmatpush1.msra.mxu0 %v1790
    %1829 = vmatprep.subr.mxu0 %v1787
    %1830 = vmatpush1.msra.mxu0 %v1786
    %1831 = vmatprep.subr.mxu0 %v1783
    %1832 = vmatpush1.msra.mxu0 %v1782
    %1833 = vmatprep.subr.mxu0 %v1779
    %1834 = vmatpush1.msra.mxu0 %v1778
    %1835 = vmatprep.subr.mxu0 %v1775
    %1836 = vmatpush1.msra.mxu0 %v1774
    %1837 = vmatprep.subr.mxu0 %v1771
    %1838 = vmatpush1.msra.mxu0 %v1770
    %1839 = vmatprep.subr.mxu0 %v1767
    %1840 = vmatpush1.msra.mxu0 %v1766
    %1841 = vmatprep.subr.mxu0 %v1763
    %1842 = vmatpush1.msra.mxu0 %v1762
    %1843 = vmatprep.subr.mxu0 %v1759
    %1844 = vmatpush1.msra.mxu0 %v1758
    %1845 = vmatprep.subr.mxu0 %v1755
    %1846 = vmatpush1.msra.mxu0 %v1754
    %1847 = vmatprep.subr.mxu0 %v1751
    %1848 = vmatpush1.msra.mxu0 %v1750
    %1849 = vmatprep.subr.mxu0 0.0
    %1850 = vmatpush2.msra.mxu0 0.0
    %1851 = vmatprep.subr.mxu0 0.0
    %1852 = vmatpush2.msra.mxu0 0.0
    %1853 = vmatprep.subr.mxu0 0.0
    %1854 = vmatpush2.msra.mxu0 0.0
    %1855 = vmatprep.subr.mxu0 0.0
    %1856 = vmatpush2.msra.mxu0 0.0
    %1857 = vmatprep.subr.mxu0 0.0
    %1858 = vmatpush2.msra.mxu0 0.0
    %1859 = vmatprep.subr.mxu0 0.0
    %1860 = vmatpush2.msra.mxu0 0.0
    %1861 = vmatprep.subr.mxu0 0.0
    %1862 = vmatpush2.msra.mxu0 0.0
    %1863 = vmatprep.subr.mxu0 0.0
    %1864 = vmatpush2.msra.mxu0 0.0
    %1865 = vmatprep.subr.mxu0 0.0
    %1866 = vmatpush2.msra.mxu0 0.0
    %1867 = vmatprep.subr.mxu0 0.0
    %1868 = vmatpush2.msra.mxu0 0.0
    %1869 = vmatprep.subr.mxu0 0.0
    %1870 = vmatpush2.msra.mxu0 0.0
    %1871 = vmatprep.subr.mxu0 0.0
    %1872 = vmatpush2.msra.mxu0 0.0
    %1873 = vmatprep.subr.mxu0 0.0
    %1874 = vmatpush2.msra.mxu0 0.0
    %1875 = vmatprep.subr.mxu0 0.0
    %1876 = vmatpush2.msra.mxu0 0.0
    %1877 = vmatprep.subr.mxu0 0.0
    %1878 = vmatpush2.msra.mxu0 0.0
    %1879 = vmatprep.subr.mxu0 0.0
    %1880 = vmatpush2.msra.mxu0 0.0
    %1881 = vmatprep.mubr.f32.mxu0 0.0
    %1882 = vmatmul.mubr.f32.gmra.mxu0 %v1815
    %v1883 = vpop.f32.mrf.mxu0
    %v1884 = vadd.f32 0.0, %v1883
    %v1885 = vpop.f32.mrf.mxu0
    %v1886 = vadd.f32 0.0, %v1885
    %1887 = vdwg.mxu0
    %1888 = vmatprep.subr.mxu0 %v1813
    %1889 = vmatpush1.msra.mxu0 %v1812
    %1890 = vmatprep.subr.mxu0 %v1809
    %1891 = vmatpush1.msra.mxu0 %v1808
    %1892 = vmatprep.subr.mxu0 %v1805
    %1893 = vmatpush1.msra.mxu0 %v1804
    %1894 = vmatprep.subr.mxu0 %v1801
    %1895 = vmatpush1.msra.mxu0 %v1800
    %1896 = vmatprep.subr.mxu0 %v1797
    %1897 = vmatpush1.msra.mxu0 %v1796
    %1898 = vmatprep.subr.mxu0 %v1793
    %1899 = vmatpush1.msra.mxu0 %v1792
    %1900 = vmatprep.subr.mxu0 %v1789
    %1901 = vmatpush1.msra.mxu0 %v1788
    %1902 = vmatprep.subr.mxu0 %v1785
    %1903 = vmatpush1.msra.mxu0 %v1784
    %1904 = vmatprep.subr.mxu0 %v1781
    %1905 = vmatpush1.msra.mxu0 %v1780
    %1906 = vmatprep.subr.mxu0 %v1777
    %1907 = vmatpush1.msra.mxu0 %v1776
    %1908 = vmatprep.subr.mxu0 %v1773
    %1909 = vmatpush1.msra.mxu0 %v1772
    %1910 = vmatprep.subr.mxu0 %v1769
    %1911 = vmatpush1.msra.mxu0 %v1768
    %1912 = vmatprep.subr.mxu0 %v1765
    %1913 = vmatpush1.msra.mxu0 %v1764
    %1914 = vmatprep.subr.mxu0 %v1761
    %1915 = vmatpush1.msra.mxu0 %v1760
    %1916 = vmatprep.subr.mxu0 %v1757
    %1917 = vmatpush1.msra.mxu0 %v1756
    %1918 = vmatprep.subr.mxu0 %v1753
    %1919 = vmatpush1.msra.mxu0 %v1752
    %1920 = vmatprep.subr.mxu0 0.0
    %1921 = vmatpush2.msra.mxu0 0.0
    %1922 = vmatprep.subr.mxu0 0.0
    %1923 = vmatpush2.msra.mxu0 0.0
    %1924 = vmatprep.subr.mxu0 0.0
    %1925 = vmatpush2.msra.mxu0 0.0
    %1926 = vmatprep.subr.mxu0 0.0
    %1927 = vmatpush2.msra.mxu0 0.0
    %1928 = vmatprep.subr.mxu0 0.0
    %1929 = vmatpush2.msra.mxu0 0.0
    %1930 = vmatprep.subr.mxu0 0.0
    %1931 = vmatpush2.msra.mxu0 0.0
    %1932 = vmatprep.subr.mxu0 0.0
    %1933 = vmatpush2.msra.mxu0 0.0
    %1934 = vmatprep.subr.mxu0 0.0
    %1935 = vmatpush2.msra.mxu0 0.0
    %1936 = vmatprep.subr.mxu0 0.0
    %1937 = vmatpush2.msra.mxu0 0.0
    %1938 = vmatprep.subr.mxu0 0.0
    %1939 = vmatpush2.msra.mxu0 0.0
    %1940 = vmatprep.subr.mxu0 0.0
    %1941 = vmatpush2.msra.mxu0 0.0
    %1942 = vmatprep.subr.mxu0 0.0
    %1943 = vmatpush2.msra.mxu0 0.0
    %1944 = vmatprep.subr.mxu0 0.0
    %1945 = vmatpush2.msra.mxu0 0.0
    %1946 = vmatprep.subr.mxu0 0.0
    %1947 = vmatpush2.msra.mxu0 0.0
    %1948 = vmatprep.subr.mxu0 0.0
    %1949 = vmatpush2.msra.mxu0 0.0
    %1950 = vmatprep.subr.mxu0 0.0
    %1951 = vmatpush2.msra.mxu0 0.0
    %1952 = vmatprep.mubr.f32.mxu0 0.0
    %1953 = vmatmul.mubr.f32.gmra.mxu0 %v1815
    %v1954 = vpop.f32.mrf.mxu0
    %v1955 = vadd.f32 0.0, %v1954
    %v1956 = vpop.f32.mrf.mxu0
    %v1957 = vadd.f32 0.0, %v1956
    %1958 = vdwg.mxu0
    %v1963 = vrot.slane %v1884, 4
    %v1964 = vrot.slane %v1886, 4
    %v1965 = vrot.slane %v1955, 4
    %v1966 = vrot.slane %v1957, 4
    %v1971 = vadd.f32 %v187, %v1963
    %v1972 = vadd.f32 %v189, %v1964
    %v1973 = vadd.f32 %v264, %v1965
    %v1974 = vadd.f32 %v266, %v1966
    %v1975 = vxor.u32 %v1971, 2147483648
    %v1976 = vmul.f32 %v1975, 1.442695
    %v1977 = vpow.pop %v1976
    %v1978 = vadd.f32 %v1977, 1.0
    %v1979 = vrcp.pop %v1978
    %v1980 = vmul.f32 1.0, %v1979
    %v1981 = vxor.u32 %v1972, 2147483648
    %v1982 = vmul.f32 %v1981, 1.442695
    %v1983 = vpow.pop %v1982
    %v1984 = vadd.f32 %v1983, 1.0
    %v1985 = vrcp.pop %v1984
    %v1986 = vmul.f32 1.0, %v1985
    %v1987 = vxor.u32 %v1973, 2147483648
    %v1988 = vmul.f32 %v1987, 1.442695
    %v1989 = vpow.pop %v1988
    %v1990 = vadd.f32 %v1989, 1.0
    %v1991 = vrcp.pop %v1990
    %v1992 = vmul.f32 1.0, %v1991
    %v1993 = vtanh.pop %v1974
    %v1994 = vmul.f32 %v1986, %v1993
    %v1996 = vrot.slane %v1746, 6
    %v1998 = vmul.f32 %v1980, %v1996
    %v1999 = vadd.f32 %v1994, %v1998
    %v2000 = vtanh.pop %v1999
    %v2001 = vmul.f32 %v1992, %v2000
    %2002 = vst [vmem:[#allocation2 + $0x8] sm:$0x30] %v2001
    %v2003 = vld [vmem:[#allocation3] sm:$0xff]
    %v2004 = vld [vmem:[#allocation3 + $0x8] sm:$0xff]
    %v2005 = vld [vmem:[#allocation3 + $0x10] sm:$0xff]
    %v2006 = vld [vmem:[#allocation3 + $0x18] sm:$0xff]
    %v2007 = vld [vmem:[#allocation3 + $0x20] sm:$0xff]
    %v2008 = vld [vmem:[#allocation3 + $0x28] sm:$0xff]
    %v2009 = vld [vmem:[#allocation3 + $0x30] sm:$0xff]
    %v2010 = vld [vmem:[#allocation3 + $0x38] sm:$0xff]
    %v2011 = vld [vmem:[#allocation3 + $0x40] sm:$0xff]
    %v2012 = vld [vmem:[#allocation3 + $0x48] sm:$0xff]
    %v2013 = vld [vmem:[#allocation3 + $0x50] sm:$0xff]
    %v2014 = vld [vmem:[#allocation3 + $0x58] sm:$0xff]
    %v2015 = vld [vmem:[#allocation3 + $0x60] sm:$0xff]
    %v2016 = vld [vmem:[#allocation3 + $0x68] sm:$0xff]
    %v2017 = vld [vmem:[#allocation3 + $0x70] sm:$0xff]
    %v2018 = vld [vmem:[#allocation3 + $0x78] sm:$0xff]
    %v2019 = vld [vmem:[#allocation3 + $0x80] sm:$0xff]
    %v2020 = vld [vmem:[#allocation3 + $0x88] sm:$0xff]
    %v2021 = vld [vmem:[#allocation3 + $0x90] sm:$0xff]
    %v2022 = vld [vmem:[#allocation3 + $0x98] sm:$0xff]
    %v2023 = vld [vmem:[#allocation3 + $0xa0] sm:$0xff]
    %v2024 = vld [vmem:[#allocation3 + $0xa8] sm:$0xff]
    %v2025 = vld [vmem:[#allocation3 + $0xb0] sm:$0xff]
    %v2026 = vld [vmem:[#allocation3 + $0xb8] sm:$0xff]
    %v2027 = vld [vmem:[#allocation3 + $0xc0] sm:$0xff]
    %v2028 = vld [vmem:[#allocation3 + $0xc8] sm:$0xff]
    %v2029 = vld [vmem:[#allocation3 + $0xd0] sm:$0xff]
    %v2030 = vld [vmem:[#allocation3 + $0xd8] sm:$0xff]
    %v2031 = vld [vmem:[#allocation3 + $0xe0] sm:$0xff]
    %v2032 = vld [vmem:[#allocation3 + $0xe8] sm:$0xff]
    %v2033 = vld [vmem:[#allocation3 + $0xf0] sm:$0xff]
    %v2034 = vld [vmem:[#allocation3 + $0xf8] sm:$0xff]
    %v2035 = vld [vmem:[#allocation3 + $0x100] sm:$0xff]
    %v2036 = vld [vmem:[#allocation3 + $0x108] sm:$0xff]
    %v2037 = vld [vmem:[#allocation3 + $0x110] sm:$0xff]
    %v2038 = vld [vmem:[#allocation3 + $0x118] sm:$0xff]
    %v2039 = vld [vmem:[#allocation3 + $0x120] sm:$0xff]
    %v2040 = vld [vmem:[#allocation3 + $0x128] sm:$0xff]
    %v2041 = vld [vmem:[#allocation3 + $0x130] sm:$0xff]
    %v2042 = vld [vmem:[#allocation3 + $0x138] sm:$0xff]
    %v2043 = vld [vmem:[#allocation3 + $0x140] sm:$0xff]
    %v2044 = vld [vmem:[#allocation3 + $0x148] sm:$0xff]
    %v2045 = vld [vmem:[#allocation3 + $0x150] sm:$0xff]
    %v2046 = vld [vmem:[#allocation3 + $0x158] sm:$0xff]
    %v2047 = vld [vmem:[#allocation3 + $0x160] sm:$0xff]
    %v2048 = vld [vmem:[#allocation3 + $0x168] sm:$0xff]
    %v2049 = vld [vmem:[#allocation3 + $0x170] sm:$0xff]
    %v2050 = vld [vmem:[#allocation3 + $0x178] sm:$0xff]
    %v2051 = vld [vmem:[#allocation3 + $0x180] sm:$0xff]
    %v2052 = vld [vmem:[#allocation3 + $0x188] sm:$0xff]
    %v2053 = vld [vmem:[#allocation3 + $0x190] sm:$0xff]
    %v2054 = vld [vmem:[#allocation3 + $0x198] sm:$0xff]
    %v2055 = vld [vmem:[#allocation3 + $0x1a0] sm:$0xff]
    %v2056 = vld [vmem:[#allocation3 + $0x1a8] sm:$0xff]
    %v2057 = vld [vmem:[#allocation3 + $0x1b0] sm:$0xff]
    %v2058 = vld [vmem:[#allocation3 + $0x1b8] sm:$0xff]
    %v2059 = vld [vmem:[#allocation3 + $0x1c0] sm:$0xff]
    %v2060 = vld [vmem:[#allocation3 + $0x1c8] sm:$0xff]
    %v2061 = vld [vmem:[#allocation3 + $0x1d0] sm:$0xff]
    %v2062 = vld [vmem:[#allocation3 + $0x1d8] sm:$0xff]
    %v2063 = vld [vmem:[#allocation3 + $0x1e0] sm:$0xff]
    %v2064 = vld [vmem:[#allocation3 + $0x1e8] sm:$0xff]
    %v2065 = vld [vmem:[#allocation3 + $0x1f0] sm:$0xff]
    %v2066 = vld [vmem:[#allocation3 + $0x1f8] sm:$0xff]
    %v2068 = vrot.slane %v2001, 4
    %2070 = vmatprep.subr.mxu0 %v2064
    %2071 = vmatpush1.msra.mxu0 %v2063
    %2072 = vmatprep.subr.mxu0 %v2060
    %2073 = vmatpush1.msra.mxu0 %v2059
    %2074 = vmatprep.subr.mxu0 %v2056
    %2075 = vmatpush1.msra.mxu0 %v2055
    %2076 = vmatprep.subr.mxu0 %v2052
    %2077 = vmatpush1.msra.mxu0 %v2051
    %2078 = vmatprep.subr.mxu0 %v2048
    %2079 = vmatpush1.msra.mxu0 %v2047
    %2080 = vmatprep.subr.mxu0 %v2044
    %2081 = vmatpush1.msra.mxu0 %v2043
    %2082 = vmatprep.subr.mxu0 %v2040
    %2083 = vmatpush1.msra.mxu0 %v2039
    %2084 = vmatprep.subr.mxu0 %v2036
    %2085 = vmatpush1.msra.mxu0 %v2035
    %2086 = vmatprep.subr.mxu0 %v2032
    %2087 = vmatpush1.msra.mxu0 %v2031
    %2088 = vmatprep.subr.mxu0 %v2028
    %2089 = vmatpush1.msra.mxu0 %v2027
    %2090 = vmatprep.subr.mxu0 %v2024
    %2091 = vmatpush1.msra.mxu0 %v2023
    %2092 = vmatprep.subr.mxu0 %v2020
    %2093 = vmatpush1.msra.mxu0 %v2019
    %2094 = vmatprep.subr.mxu0 %v2016
    %2095 = vmatpush1.msra.mxu0 %v2015
    %2096 = vmatprep.subr.mxu0 %v2012
    %2097 = vmatpush1.msra.mxu0 %v2011
    %2098 = vmatprep.subr.mxu0 %v2008
    %2099 = vmatpush1.msra.mxu0 %v2007
    %2100 = vmatprep.subr.mxu0 %v2004
    %2101 = vmatpush1.msra.mxu0 %v2003
    %2102 = vmatprep.subr.mxu0 0.0
    %2103 = vmatpush2.msra.mxu0 0.0
    %2104 = vmatprep.subr.mxu0 0.0
    %2105 = vmatpush2.msra.mxu0 0.0
    %2106 = vmatprep.subr.mxu0 0.0
    %2107 = vmatpush2.msra.mxu0 0.0
    %2108 = vmatprep.subr.mxu0 0.0
    %2109 = vmatpush2.msra.mxu0 0.0
    %2110 = vmatprep.subr.mxu0 0.0
    %2111 = vmatpush2.msra.mxu0 0.0
    %2112 = vmatprep.subr.mxu0 0.0
    %2113 = vmatpush2.msra.mxu0 0.0
    %2114 = vmatprep.subr.mxu0 0.0
    %2115 = vmatpush2.msra.mxu0 0.0
    %2116 = vmatprep.subr.mxu0 0.0
    %2117 = vmatpush2.msra.mxu0 0.0
    %2118 = vmatprep.subr.mxu0 0.0
    %2119 = vmatpush2.msra.mxu0 0.0
    %2120 = vmatprep.subr.mxu0 0.0
    %2121 = vmatpush2.msra.mxu0 0.0
    %2122 = vmatprep.subr.mxu0 0.0
    %2123 = vmatpush2.msra.mxu0 0.0
    %2124 = vmatprep.subr.mxu0 0.0
    %2125 = vmatpush2.msra.mxu0 0.0
    %2126 = vmatprep.subr.mxu0 0.0
    %2127 = vmatpush2.msra.mxu0 0.0
    %2128 = vmatprep.subr.mxu0 0.0
    %2129 = vmatpush2.msra.mxu0 0.0
    %2130 = vmatprep.subr.mxu0 0.0
    %2131 = vmatpush2.msra.mxu0 0.0
    %2132 = vmatprep.subr.mxu0 0.0
    %2133 = vmatpush2.msra.mxu0 0.0
    %2134 = vmatprep.mubr.f32.mxu0 0.0
    %2135 = vmatmul.mubr.f32.gmra.mxu0 %v2068
    %v2136 = vpop.f32.mrf.mxu0
    %v2137 = vadd.f32 0.0, %v2136
    %v2138 = vpop.f32.mrf.mxu0
    %v2139 = vadd.f32 0.0, %v2138
    %2140 = vdwg.mxu0
    %2141 = vmatprep.subr.mxu0 %v2066
    %2142 = vmatpush1.msra.mxu0 %v2065
    %2143 = vmatprep.subr.mxu0 %v2062
    %2144 = vmatpush1.msra.mxu0 %v2061
    %2145 = vmatprep.subr.mxu0 %v2058
    %2146 = vmatpush1.msra.mxu0 %v2057
    %2147 = vmatprep.subr.mxu0 %v2054
    %2148 = vmatpush1.msra.mxu0 %v2053
    %2149 = vmatprep.subr.mxu0 %v2050
    %2150 = vmatpush1.msra.mxu0 %v2049
    %2151 = vmatprep.subr.mxu0 %v2046
    %2152 = vmatpush1.msra.mxu0 %v2045
    %2153 = vmatprep.subr.mxu0 %v2042
    %2154 = vmatpush1.msra.mxu0 %v2041
    %2155 = vmatprep.subr.mxu0 %v2038
    %2156 = vmatpush1.msra.mxu0 %v2037
    %2157 = vmatprep.subr.mxu0 %v2034
    %2158 = vmatpush1.msra.mxu0 %v2033
    %2159 = vmatprep.subr.mxu0 %v2030
    %2160 = vmatpush1.msra.mxu0 %v2029
    %2161 = vmatprep.subr.mxu0 %v2026
    %2162 = vmatpush1.msra.mxu0 %v2025
    %2163 = vmatprep.subr.mxu0 %v2022
    %2164 = vmatpush1.msra.mxu0 %v2021
    %2165 = vmatprep.subr.mxu0 %v2018
    %2166 = vmatpush1.msra.mxu0 %v2017
    %2167 = vmatprep.subr.mxu0 %v2014
    %2168 = vmatpush1.msra.mxu0 %v2013
    %2169 = vmatprep.subr.mxu0 %v2010
    %2170 = vmatpush1.msra.mxu0 %v2009
    %2171 = vmatprep.subr.mxu0 %v2006
    %2172 = vmatpush1.msra.mxu0 %v2005
    %2173 = vmatprep.subr.mxu0 0.0
    %2174 = vmatpush2.msra.mxu0 0.0
    %2175 = vmatprep.subr.mxu0 0.0
    %2176 = vmatpush2.msra.mxu0 0.0
    %2177 = vmatprep.subr.mxu0 0.0
    %2178 = vmatpush2.msra.mxu0 0.0
    %2179 = vmatprep.subr.mxu0 0.0
    %2180 = vmatpush2.msra.mxu0 0.0
    %2181 = vmatprep.subr.mxu0 0.0
    %2182 = vmatpush2.msra.mxu0 0.0
    %2183 = vmatprep.subr.mxu0 0.0
    %2184 = vmatpush2.msra.mxu0 0.0
    %2185 = vmatprep.subr.mxu0 0.0
    %2186 = vmatpush2.msra.mxu0 0.0
    %2187 = vmatprep.subr.mxu0 0.0
    %2188 = vmatpush2.msra.mxu0 0.0
    %2189 = vmatprep.subr.mxu0 0.0
    %2190 = vmatpush2.msra.mxu0 0.0
    %2191 = vmatprep.subr.mxu0 0.0
    %2192 = vmatpush2.msra.mxu0 0.0
    %2193 = vmatprep.subr.mxu0 0.0
    %2194 = vmatpush2.msra.mxu0 0.0
    %2195 = vmatprep.subr.mxu0 0.0
    %2196 = vmatpush2.msra.mxu0 0.0
    %2197 = vmatprep.subr.mxu0 0.0
    %2198 = vmatpush2.msra.mxu0 0.0
    %2199 = vmatprep.subr.mxu0 0.0
    %2200 = vmatpush2.msra.mxu0 0.0
    %2201 = vmatprep.subr.mxu0 0.0
    %2202 = vmatpush2.msra.mxu0 0.0
    %2203 = vmatprep.subr.mxu0 0.0
    %2204 = vmatpush2.msra.mxu0 0.0
    %2205 = vmatprep.mubr.f32.mxu0 0.0
    %2206 = vmatmul.mubr.f32.gmra.mxu0 %v2068
    %v2207 = vpop.f32.mrf.mxu0
    %v2208 = vadd.f32 0.0, %v2207
    %v2209 = vpop.f32.mrf.mxu0
    %v2210 = vadd.f32 0.0, %v2209
    %2211 = vdwg.mxu0
    %v2216 = vrot.slane %v2137, 2
    %v2217 = vrot.slane %v2139, 2
    %v2218 = vrot.slane %v2208, 2
    %v2219 = vrot.slane %v2210, 2
    %v2224 = vadd.f32 %v187, %v2216
    %v2225 = vadd.f32 %v189, %v2217
    %v2226 = vadd.f32 %v264, %v2218
    %v2227 = vadd.f32 %v266, %v2219
    %v2228 = vxor.u32 %v2224, 2147483648
    %v2229 = vmul.f32 %v2228, 1.442695
    %v2230 = vpow.pop %v2229
    %v2231 = vadd.f32 %v2230, 1.0
    %v2232 = vrcp.pop %v2231
    %v2233 = vmul.f32 1.0, %v2232
    %v2234 = vxor.u32 %v2225, 2147483648
    %v2235 = vmul.f32 %v2234, 1.442695
    %v2236 = vpow.pop %v2235
    %v2237 = vadd.f32 %v2236, 1.0
    %v2238 = vrcp.pop %v2237
    %v2239 = vmul.f32 1.0, %v2238
    %v2240 = vxor.u32 %v2226, 2147483648
    %v2241 = vmul.f32 %v2240, 1.442695
    %v2242 = vpow.pop %v2241
    %v2243 = vadd.f32 %v2242, 1.0
    %v2244 = vrcp.pop %v2243
    %v2245 = vmul.f32 1.0, %v2244
    %v2246 = vtanh.pop %v2227
    %v2247 = vmul.f32 %v2239, %v2246
    %v2249 = vrot.slane %v1999, 6
    %v2251 = vmul.f32 %v2233, %v2249
    %v2252 = vadd.f32 %v2247, %v2251
    %v2253 = vtanh.pop %v2252
    %v2254 = vmul.f32 %v2245, %v2253
    %2255 = vst [vmem:[#allocation2 + $0x8] sm:$0xc0] %v2254
    %v2256 = vld [vmem:[#allocation2] sm:$0xff]
    %v2257 = vld [vmem:[#allocation2 + $0x8] sm:$0xff]
    %v2258 = vld [vmem:[#allocation6] sm:$0xff]
    %v2259 = vld [vmem:[#allocation6 + $0x8] sm:$0xff]
    %v2260 = vld [vmem:[#allocation6 + $0x10] sm:$0xff]
    %v2261 = vld [vmem:[#allocation6 + $0x18] sm:$0xff]
    %v2262 = vld [vmem:[#allocation6 + $0x20] sm:$0xff]
    %v2263 = vld [vmem:[#allocation6 + $0x28] sm:$0xff]
    %v2264 = vld [vmem:[#allocation6 + $0x30] sm:$0xff]
    %v2265 = vld [vmem:[#allocation6 + $0x38] sm:$0xff]
    %v2266 = vld [vmem:[#allocation6 + $0x40] sm:$0xff]
    %v2267 = vld [vmem:[#allocation6 + $0x48] sm:$0xff]
    %v2268 = vld [vmem:[#allocation6 + $0x50] sm:$0xff]
    %v2269 = vld [vmem:[#allocation6 + $0x58] sm:$0xff]
    %v2270 = vld [vmem:[#allocation6 + $0x60] sm:$0xff]
    %v2271 = vld [vmem:[#allocation6 + $0x68] sm:$0xff]
    %v2272 = vld [vmem:[#allocation6 + $0x70] sm:$0xff]
    %v2273 = vld [vmem:[#allocation6 + $0x78] sm:$0xff]
    %v2274 = vld [vmem:[%s5] sm:$0x1]
    %v2276 = vlaneseq
    %v2277 = vshrl.u32 %v2276, 7
    %v2278 = vsub.s32 0, %v2277
    %v2279 = vrot.slane %v2274, %v2278
    %2281 = vmatprep.subr.mxu0 0.0
    %2282 = vmatpush1.msra.mxu0 %v2273
    %2283 = vmatprep.subr.mxu0 0.0
    %2284 = vmatpush1.msra.mxu0 %v2272
    %2285 = vmatprep.subr.mxu0 0.0
    %2286 = vmatpush1.msra.mxu0 %v2271
    %2287 = vmatprep.subr.mxu0 0.0
    %2288 = vmatpush1.msra.mxu0 %v2270
    %2289 = vmatprep.subr.mxu0 0.0
    %2290 = vmatpush1.msra.mxu0 %v2269
    %2291 = vmatprep.subr.mxu0 0.0
    %2292 = vmatpush1.msra.mxu0 %v2268
    %2293 = vmatprep.subr.mxu0 0.0
    %2294 = vmatpush1.msra.mxu0 %v2267
    %2295 = vmatprep.subr.mxu0 0.0
    %2296 = vmatpush1.msra.mxu0 %v2266
    %2297 = vmatprep.subr.mxu0 0.0
    %2298 = vmatpush1.msra.mxu0 %v2265
    %2299 = vmatprep.subr.mxu0 0.0
    %2300 = vmatpush1.msra.mxu0 %v2264
    %2301 = vmatprep.subr.mxu0 0.0
    %2302 = vmatpush1.msra.mxu0 %v2263
    %2303 = vmatprep.subr.mxu0 0.0
    %2304 = vmatpush1.msra.mxu0 %v2262
    %2305 = vmatprep.subr.mxu0 0.0
    %2306 = vmatpush1.msra.mxu0 %v2261
    %2307 = vmatprep.subr.mxu0 0.0
    %2308 = vmatpush1.msra.mxu0 %v2260
    %2309 = vmatprep.subr.mxu0 0.0
    %2310 = vmatpush1.msra.mxu0 %v2259
    %2311 = vmatprep.subr.mxu0 0.0
    %2312 = vmatpush1.msra.mxu0 %v2258
    %2313 = vmatprep.subr.mxu0 0.0
    %2314 = vmatpush2.msra.mxu0 0.0
    %2315 = vmatprep.subr.mxu0 0.0
    %2316 = vmatpush2.msra.mxu0 0.0
    %2317 = vmatprep.subr.mxu0 0.0
    %2318 = vmatpush2.msra.mxu0 0.0
    %2319 = vmatprep.subr.mxu0 0.0
    %2320 = vmatpush2.msra.mxu0 0.0
    %2321 = vmatprep.subr.mxu0 0.0
    %2322 = vmatpush2.msra.mxu0 0.0
    %2323 = vmatprep.subr.mxu0 0.0
    %2324 = vmatpush2.msra.mxu0 0.0
    %2325 = vmatprep.subr.mxu0 0.0
    %2326 = vmatpush2.msra.mxu0 0.0
    %2327 = vmatprep.subr.mxu0 0.0
    %2328 = vmatpush2.msra.mxu0 0.0
    %2329 = vmatprep.subr.mxu0 0.0
    %2330 = vmatpush2.msra.mxu0 0.0
    %2331 = vmatprep.subr.mxu0 0.0
    %2332 = vmatpush2.msra.mxu0 0.0
    %2333 = vmatprep.subr.mxu0 0.0
    %2334 = vmatpush2.msra.mxu0 0.0
    %2335 = vmatprep.subr.mxu0 0.0
    %2336 = vmatpush2.msra.mxu0 0.0
    %2337 = vmatprep.subr.mxu0 0.0
    %2338 = vmatpush2.msra.mxu0 0.0
    %2339 = vmatprep.subr.mxu0 0.0
    %2340 = vmatpush2.msra.mxu0 0.0
    %2341 = vmatprep.subr.mxu0 0.0
    %2342 = vmatpush2.msra.mxu0 0.0
    %2343 = vmatprep.subr.mxu0 0.0
    %2344 = vmatpush2.msra.mxu0 0.0
    %2345 = vmatprep.mubr.f32.mxu0 0.0
    %2346 = vmatmul.mubr.f32.gmra.mxu0 %v2256
    %v2347 = vpop.f32.mrf.mxu0
    %v2348 = vadd.f32 %v2279, %v2347
    %v2349 = vpop.f32.mrf.mxu0
    %2350 = vmatprep.mubr.f32.mxu0 0.0
    %2351 = vmatmul.mubr.f32.gmra.mxu0 %v2257
    %v2352 = vpop.f32.mrf.mxu0
    %v2353 = vadd.f32 %v2279, %v2352
    %v2354 = vpop.f32.mrf.mxu0
    %2355 = vdwg.mxu0
    %v2356 = vmul.f32 %v2348, %v2348
    %v2357 = vmul.f32 %v2353, %v2353
    %v2358 = vld [vmem:[#allocation8] sm:$0xff]
    %v2359 = vld [vmem:[#allocation8 + $0x8] sm:$0xff]
    %v2360 = vld [vmem:[#allocation8 + $0x10] sm:$0xff]
    %v2361 = vld [vmem:[#allocation8 + $0x18] sm:$0xff]
    %v2362 = vld [vmem:[#allocation8 + $0x20] sm:$0xff]
    %v2363 = vld [vmem:[#allocation8 + $0x28] sm:$0xff]
    %v2364 = vld [vmem:[#allocation8 + $0x30] sm:$0xff]
    %v2365 = vld [vmem:[#allocation8 + $0x38] sm:$0xff]
    %v2366 = vld [vmem:[#allocation8 + $0x40] sm:$0xff]
    %v2367 = vld [vmem:[#allocation8 + $0x48] sm:$0xff]
    %v2368 = vld [vmem:[#allocation8 + $0x50] sm:$0xff]
    %v2369 = vld [vmem:[#allocation8 + $0x58] sm:$0xff]
    %v2370 = vld [vmem:[#allocation8 + $0x60] sm:$0xff]
    %v2371 = vld [vmem:[#allocation8 + $0x68] sm:$0xff]
    %v2372 = vld [vmem:[#allocation8 + $0x70] sm:$0xff]
    %v2373 = vld [vmem:[#allocation8 + $0x78] sm:$0xff]
    %2374 = vmatprep.subr.mxu0 0.0
    %2375 = vmatpush1.msra.mxu0 %v2373
    %2376 = vmatprep.subr.mxu0 0.0
    %2377 = vmatpush1.msra.mxu0 %v2372
    %2378 = vmatprep.subr.mxu0 0.0
    %2379 = vmatpush1.msra.mxu0 %v2371
    %2380 = vmatprep.subr.mxu0 0.0
    %2381 = vmatpush1.msra.mxu0 %v2370
    %2382 = vmatprep.subr.mxu0 0.0
    %2383 = vmatpush1.msra.mxu0 %v2369
    %2384 = vmatprep.subr.mxu0 0.0
    %2385 = vmatpush1.msra.mxu0 %v2368
    %2386 = vmatprep.subr.mxu0 0.0
    %2387 = vmatpush1.msra.mxu0 %v2367
    %2388 = vmatprep.subr.mxu0 0.0
    %2389 = vmatpush1.msra.mxu0 %v2366
    %2390 = vmatprep.subr.mxu0 0.0
    %2391 = vmatpush1.msra.mxu0 %v2365
    %2392 = vmatprep.subr.mxu0 0.0
    %2393 = vmatpush1.msra.mxu0 %v2364
    %2394 = vmatprep.subr.mxu0 0.0
    %2395 = vmatpush1.msra.mxu0 %v2363
    %2396 = vmatprep.subr.mxu0 0.0
    %2397 = vmatpush1.msra.mxu0 %v2362
    %2398 = vmatprep.subr.mxu0 0.0
    %2399 = vmatpush1.msra.mxu0 %v2361
    %2400 = vmatprep.subr.mxu0 0.0
    %2401 = vmatpush1.msra.mxu0 %v2360
    %2402 = vmatprep.subr.mxu0 0.0
    %2403 = vmatpush1.msra.mxu0 %v2359
    %2404 = vmatprep.subr.mxu0 0.0
    %2405 = vmatpush1.msra.mxu0 %v2358
    %2406 = vmatprep.subr.mxu0 0.0
    %2407 = vmatpush2.msra.mxu0 0.0
    %2408 = vmatprep.subr.mxu0 0.0
    %2409 = vmatpush2.msra.mxu0 0.0
    %2410 = vmatprep.subr.mxu0 0.0
    %2411 = vmatpush2.msra.mxu0 0.0
    %2412 = vmatprep.subr.mxu0 0.0
    %2413 = vmatpush2.msra.mxu0 0.0
    %2414 = vmatprep.subr.mxu0 0.0
    %2415 = vmatpush2.msra.mxu0 0.0
    %2416 = vmatprep.subr.mxu0 0.0
    %2417 = vmatpush2.msra.mxu0 0.0
    %2418 = vmatprep.subr.mxu0 0.0
    %2419 = vmatpush2.msra.mxu0 0.0
    %2420 = vmatprep.subr.mxu0 0.0
    %2421 = vmatpush2.msra.mxu0 0.0
    %2422 = vmatprep.subr.mxu0 0.0
    %2423 = vmatpush2.msra.mxu0 0.0
    %2424 = vmatprep.subr.mxu0 0.0
    %2425 = vmatpush2.msra.mxu0 0.0
    %2426 = vmatprep.subr.mxu0 0.0
    %2427 = vmatpush2.msra.mxu0 0.0
    %2428 = vmatprep.subr.mxu0 0.0
    %2429 = vmatpush2.msra.mxu0 0.0
    %2430 = vmatprep.subr.mxu0 0.0
    %2431 = vmatpush2.msra.mxu0 0.0
    %2432 = vmatprep.subr.mxu0 0.0
    %2433 = vmatpush2.msra.mxu0 0.0
    %2434 = vmatprep.subr.mxu0 0.0
    %2435 = vmatpush2.msra.mxu0 0.0
    %2436 = vmatprep.subr.mxu0 0.0
    %2437 = vmatpush2.msra.mxu0 0.0
    %2438 = vmatprep.mubr.f32.mxu0 0.0
    %2439 = vmatmul.mubr.f32.gmra.mxu0 %v2356
    %v2440 = vpop.f32.mrf.mxu0
    %v2441 = vadd.f32 1e-12, %v2440
    %v2442 = vpop.f32.mrf.mxu0
    %2443 = vmatprep.mubr.f32.mxu0 0.0
    %2444 = vmatmul.mubr.f32.gmra.mxu0 %v2357
    %v2445 = vpop.f32.mrf.mxu0
    %v2446 = vadd.f32 1e-12, %v2445
    %v2447 = vpop.f32.mrf.mxu0
    %2448 = vdwg.mxu0
    %v2449 = vrsqrt.pop %v2441
    %v2450 = vrsqrt.pop %v2446
    %v2451 = vmul.f32 %v2348, %v2449
    %v2452 = vmul.f32 %v2353, %v2450
    %2453 = vst [vmem:[#allocation9] sm:$0xff] %v2451
    %2454 = vst [vmem:[#allocation9 + $0x8] sm:$0xff] %v2452
    // Predicated region
    $region42: #{tpu_custom_call.1} parent=1 // pred_check
      _
    $region43: #{tpu_custom_call.1} parent=1 // pred_check_branch
      %2456 = sbr.rel (0) target = $region45
    $region44: #{tpu_custom_call.1} parent=1 // pred_region
      %s2458 = ssub.s32 256, 256
      %2459 = vsyncadd [#allocation5], %s2458
      %s2460 = sshll.u32 [#allocation9], 4
      %s2461 = int_to_ptr.vmem [resolvable:$true] %s2460
      %2466 = dma.vmem_to_hbm [thread:$0]  %s2461, 256, %s7, [#allocation5], 128, 128, 8
    $region45: #{tpu_custom_call.1} parent=1 // pred_fallthru
      _
    // Predicated region
    $region46: #{tpu_custom_call.1} parent=1 // pred_check
      _
    $region47: #{tpu_custom_call.1} parent=1 // pred_check_branch
      %2468 = sbr.rel (0) target = $region49
    $region48: #{tpu_custom_call.1} parent=1 // pred_region
      %2469 = dma.done [#allocation5], 256
    $region49: #{tpu_custom_call.1} parent=1 // pred_fallthru
      _
    %2470 = vsyncpa [#allocation4], 1
    %2471 = vsyncpa [#allocation7], 1
    %2472 = vsyncpa [#allocation5], 1

</llo_original>
